<compile_context>
chip_gen: v5e
topology: v5e:2x2
jax: 0.10.0
libtpu: 0.0.40
codegen_flags: <defaults>
</compile_context>

<pallas_src>
import numpy as np
import jax
import jax.numpy as jnp
from jax.experimental import pallas as pl
from jax.experimental.pallas import tpu as pltpu


def _lstm_cell(gates, c_prev, H):
    """One LSTM cell update from pre-activation gates (B, 4H), order i,f,g,o."""
    sig = jax.nn.sigmoid(gates)   # one full-vreg EUP pass (i, f, o)
    tng = jnp.tanh(gates)         # one full-vreg EUP pass (g) — same cost as a slice
    i_g = sig[:, 0 * H:1 * H]
    f_g = sig[:, 1 * H:2 * H]
    g_g = tng[:, 2 * H:3 * H]
    o_g = sig[:, 3 * H:4 * H]
    c_new = f_g * c_prev + i_g * g_g
    h_new = o_g * jnp.tanh(c_new)
    return h_new, c_new


def _make_lstm_kernel(num_layers, B, H, T):
    """Single-invocation kernel: full sequence unrolled, all layers per step."""

    def kernel(*refs):
        x_ref = refs[0]                       # (T*B, I0)      B is sublane-padded
        w_ih0 = refs[1][...]                  # (I0, 4H)       pre-transposed
        w_hh = [refs[2][...]]                 # layer 0 hh     (H, 4H)
        b0 = refs[3][...]                     # (1, 4H)        b_ih0 + b_hh0
        idx = 4
        w_ih = [None]                         # layer-0 ih handled via hoisted x_proj
        b = [None]
        for _ in range(num_layers - 1):
            w_ih.append(refs[idx][...])       # (H, 4H)
            w_hh.append(refs[idx + 1][...])   # (H, 4H)
            b.append(refs[idx + 2][...])      # (1, 4H)        b_ih + b_hh
            idx += 3
        fc1_w_ref = refs[idx]                 # (H, 128)   -- NOT read yet (deferred)
        fc1_b_ref = refs[idx + 1]             # (1, 128)
        fc_w_ref = refs[idx + 2]              # (128, C_pad)
        fc_b_ref = refs[idx + 3]              # (1, C_pad)
        out_ref = refs[idx + 4]               # (L*B, C_pad)

        # Hoisted layer-0 input projection over ALL time steps (+ fused bias):
        # one (T*B, I0) x (I0, 4H) matmul instead of T tiny ones.
        x_proj = jnp.dot(x_ref[...], w_ih0,
                         preferred_element_type=jnp.float32) + b0     # (T*B, 4H)

        h = [jnp.zeros((B, H), jnp.float32) for _ in range(num_layers)]
        c = [jnp.zeros((B, H), jnp.float32) for _ in range(num_layers)]

        # Fully-unrolled recurrence (T is a small static constant).
        for t in range(T):
            # hh products depend only on the PREVIOUS step's h for every layer,
            # so they are all issued up-front and can overlap the cell math of
            # the lower layers within this step.
            hh = [jnp.dot(h[l], w_hh[l], preferred_element_type=jnp.float32)
                  for l in range(num_layers)]

            # ---- layer 0: x-projection already done, only the hh product left.
            gates = x_proj[t * B:(t + 1) * B, :] + hh[0]
            h[0], c[0] = _lstm_cell(gates, c[0], H)
            inp = h[0]

            # ---- layers >= 1: only the ih matmul sits behind layer l-1.
            for l in range(1, num_layers):
                gates = (jnp.dot(inp, w_ih[l], preferred_element_type=jnp.float32)
                         + hh[l] + b[l])
                h[l], c[l] = _lstm_cell(gates, c[l], H)
                inp = h[l]

        # Head weights are loaded only now, after the recurrence, so they do not
        # occupy vregs during the hot unrolled loop (the head runs once).
        fc1_w = fc1_w_ref[...]
        fc1_b = fc1_b_ref[...]
        fc_w = fc_w_ref[...]
        fc_b = fc_b_ref[...]

        # MLP head on the final hidden state of every layer
        # (h_n.view(-1, hidden_size) in the PyTorch code).
        h_n = jnp.concatenate(h, axis=0)                               # (L*B, H)
        z = jnp.maximum(h_n, 0.0)
        z = jnp.dot(z, fc1_w, preferred_element_type=jnp.float32) + fc1_b
        z = jnp.maximum(z, 0.0)
        z = jnp.dot(z, fc_w, preferred_element_type=jnp.float32) + fc_b
        out_ref[...] = z.astype(out_ref.dtype)

    return kernel


def lstm_forward(x, params, *, hidden_size, num_layers, window_size, num_classes):
    B = x.shape[0]
    H, L, C, T = hidden_size, num_layers, num_classes, window_size

    # Pad batch to a full 8-sublane tile so all per-step slices / state tensors
    # are vreg-aligned inside the kernel; padded rows are dropped afterwards.
    B_pad = max(8, ((B + 7) // 8) * 8)

    # PyTorch x.view(window_size, len(x), -1): raw reinterpretation of the
    # (batch, window, input) buffer.  Row-major reshape reproduces it exactly.
    x_seq = jnp.reshape(x, (T, B, -1)).astype(jnp.float32)
    I0 = x_seq.shape[-1]
    x_pad = jnp.zeros((T, B_pad, I0), jnp.float32).at[:, :B, :].set(x_seq)
    x_flat = x_pad.reshape(T * B_pad, I0)

    # Lane-dense head output: round num_classes up to a full 128-lane tile,
    # zero-pad fc weights/bias host-side, slice back after the kernel.
    C_pad = max(128, ((C + 127) // 128) * 128)
    fc_w_pad = jnp.zeros((128, C_pad), jnp.float32).at[:, :C].set(params["fc_w"].T)
    fc_b_pad = jnp.zeros((1, C_pad), jnp.float32).at[:, :C].set(
        params["fc_b"].reshape(1, C))

    inputs = [
        x_flat,                                                    # (T*B_pad, I0)
        params["w_ih_0"].T,                                        # (I0, 4H)
        params["w_hh_0"].T,                                        # (H,  4H)
        (params["b_ih_0"] + params["b_hh_0"]).reshape(1, 4 * H),   # fused bias
    ]
    for l in range(1, L):
        inputs.append(params[f"w_ih_{l}"].T)                       # (H, 4H)
        inputs.append(params[f"w_hh_{l}"].T)                       # (H, 4H)
        inputs.append(
            (params[f"b_ih_{l}"] + params[f"b_hh_{l}"]).reshape(1, 4 * H))
    inputs += [
        params["fc1_w"].T,                 # (H, 128)
        params["fc1_b"].reshape(1, 128),   # (1, 128)
        fc_w_pad,                          # (128, C_pad)
        fc_b_pad,                          # (1, C_pad)
    ]

    vmem_spec = pl.BlockSpec(memory_space=pltpu.MemorySpace.VMEM)
    out_pad = pl.pallas_call(
        _make_lstm_kernel(L, B_pad, H, T),
        out_shape=jax.ShapeDtypeStruct((L * B_pad, C_pad), jnp.float32),
        in_specs=[vmem_spec] * len(inputs),
        out_specs=vmem_spec,
    )(*inputs)

    # Drop batch / class padding (layer-major row order matches PyTorch h_n.view).
    out = out_pad.reshape(L, B_pad, C_pad)[:, :B, :C].reshape(L * B, C)
    return out


def lstm_reference(x, params, *, hidden_size, num_layers, window_size, num_classes):
    """Pure-JAX reference matching PyTorch semantics (for verification)."""
    B = x.shape[0]
    H, L = hidden_size, num_layers
    x_seq = jnp.reshape(x, (window_size, B, -1))
    h = jnp.zeros((L, B, H), jnp.float32)
    c = jnp.zeros((L, B, H), jnp.float32)
    for t in range(window_size):
        inp = x_seq[t]
        for l in range(L):
            gates = (inp @ params[f"w_ih_{l}"].T + params[f"b_ih_{l}"]
                     + h[l] @ params[f"w_hh_{l}"].T + params[f"b_hh_{l}"])
            i_g = jax.nn.sigmoid(gates[:, 0 * H:1 * H])
            f_g = jax.nn.sigmoid(gates[:, 1 * H:2 * H])
            g_g = jnp.tanh(gates[:, 2 * H:3 * H])
            o_g = jax.nn.sigmoid(gates[:, 3 * H:4 * H])
            c_new = f_g * c[l] + i_g * g_g
            h_new = o_g * jnp.tanh(c_new)
            h = h.at[l].set(h_new)
            c = c.at[l].set(c_new)
            inp = h_new
    h_n = h.reshape(-1, H)
    z = jnp.maximum(h_n, 0.0)
    z = z @ params["fc1_w"].T + params["fc1_b"]
    z = jnp.maximum(z, 0.0)
    z = z @ params["fc_w"].T + params["fc_b"]
    return z


def init_params(key, *, num_classes, input_size, hidden_size, num_layers):
    """Deterministic param init (uniform(-k, k), k = 1/sqrt(H), like PyTorch)."""
    H = hidden_size
    k = 1.0 / np.sqrt(H)
    params = {}
    for l in range(num_layers):
        in_l = input_size if l == 0 else H
        key, k1, k2, k3, k4 = jax.random.split(key, 5)
        params[f"w_ih_{l}"] = jax.random.uniform(k1, (4 * H, in_l), jnp.float32, -k, k)
        params[f"w_hh_{l}"] = jax.random.uniform(k2, (4 * H, H), jnp.float32, -k, k)
        params[f"b_ih_{l}"] = jax.random.uniform(k3, (4 * H,), jnp.float32, -k, k)
        params[f"b_hh_{l}"] = jax.random.uniform(k4, (4 * H,), jnp.float32, -k, k)
    key, k1, k2, k3, k4 = jax.random.split(key, 5)
    kf1 = 1.0 / np.sqrt(H)
    kf2 = 1.0 / np.sqrt(128)
    params["fc1_w"] = jax.random.uniform(k1, (128, H), jnp.float32, -kf1, kf1)
    params["fc1_b"] = jax.random.uniform(k2, (128,), jnp.float32, -kf1, kf1)
    params["fc_w"] = jax.random.uniform(k3, (num_classes, 128), jnp.float32, -kf2, kf2)
    params["fc_b"] = jax.random.uniform(k4, (num_classes,), jnp.float32, -kf2, kf2)
    return params


if __name__ == "__main__":
    num_classes = 4
    input_size = 16
    hidden_size = 32
    num_layers = 2
    window_size = 8
    batch = 2

    key = jax.random.PRNGKey(0)
    key, pkey, xkey = jax.random.split(key, 3)
    params = init_params(pkey, num_classes=num_classes, input_size=input_size,
                         hidden_size=hidden_size, num_layers=num_layers)
    # x: (batch, window_size, input_size) — reinterpreted time-major inside wrapper.
    x = jax.random.normal(xkey, (batch, window_size, input_size), jnp.float32)

    out = lstm_forward(x, params, hidden_size=hidden_size, num_layers=num_layers,
                       window_size=window_size, num_classes=num_classes)
    out = jax.block_until_ready(out)

    ref = lstm_reference(x, params, hidden_size=hidden_size, num_layers=num_layers,
                         window_size=window_size, num_classes=num_classes)
    np.testing.assert_allclose(np.asarray(out), np.asarray(ref), rtol=1e-3, atol=1e-4)

    assert out.shape == (num_layers * batch, num_classes)
    print("KERNEL_OK")
</pallas_src>

<mosaic_0001>
module attributes {stable_mosaic.version = 11 : i64} {
  func.func @kernel(%arg0: memref<64x16xf32, #tpu.memory_space<vmem>>, %arg1: memref<16x128xf32, #tpu.memory_space<vmem>>, %arg2: memref<32x128xf32, #tpu.memory_space<vmem>>, %arg3: memref<1x128xf32, #tpu.memory_space<vmem>>, %arg4: memref<32x128xf32, #tpu.memory_space<vmem>>, %arg5: memref<32x128xf32, #tpu.memory_space<vmem>>, %arg6: memref<1x128xf32, #tpu.memory_space<vmem>>, %arg7: memref<32x128xf32, #tpu.memory_space<vmem>>, %arg8: memref<1x128xf32, #tpu.memory_space<vmem>>, %arg9: memref<128x128xf32, #tpu.memory_space<vmem>>, %arg10: memref<1x128xf32, #tpu.memory_space<vmem>>, %arg11: memref<16x128xf32, #tpu.memory_space<vmem>>) attributes {dimension_semantics = [], scalar_prefetch = 0 : i64, scratch_operands = 0 : i64, tpu.core_type = #tpu.core_type<tc>} {
    %c0 = arith.constant 0 : index
    %c0_0 = arith.constant 0 : index
    %0 = vector.load %arg1[%c0, %c0_0] : memref<16x128xf32, #tpu.memory_space<vmem>>, vector<16x128xf32>
    %c0_1 = arith.constant 0 : index
    %c0_2 = arith.constant 0 : index
    %1 = vector.load %arg2[%c0_1, %c0_2] : memref<32x128xf32, #tpu.memory_space<vmem>>, vector<32x128xf32>
    %c0_3 = arith.constant 0 : index
    %c0_4 = arith.constant 0 : index
    %2 = vector.load %arg3[%c0_3, %c0_4] : memref<1x128xf32, #tpu.memory_space<vmem>>, vector<1x128xf32>
    %c0_5 = arith.constant 0 : index
    %c0_6 = arith.constant 0 : index
    %3 = vector.load %arg4[%c0_5, %c0_6] : memref<32x128xf32, #tpu.memory_space<vmem>>, vector<32x128xf32>
    %c0_7 = arith.constant 0 : index
    %c0_8 = arith.constant 0 : index
    %4 = vector.load %arg5[%c0_7, %c0_8] : memref<32x128xf32, #tpu.memory_space<vmem>>, vector<32x128xf32>
    %c0_9 = arith.constant 0 : index
    %c0_10 = arith.constant 0 : index
    %5 = vector.load %arg6[%c0_9, %c0_10] : memref<1x128xf32, #tpu.memory_space<vmem>>, vector<1x128xf32>
    %c0_11 = arith.constant 0 : index
    %c0_12 = arith.constant 0 : index
    %6 = vector.load %arg0[%c0_11, %c0_12] : memref<64x16xf32, #tpu.memory_space<vmem>>, vector<64x16xf32>
    %cst = arith.constant dense<0.000000e+00> : vector<64x128xf32>
    %7 = tpu.matmul %6, %0, %cst {dimension_numbers = #tpu.dot_dimension_numbers<[1], [0], [0], [1], [0, 0, 1, 1], [], []>} : vector<64x16xf32>, vector<16x128xf32>, vector<64x128xf32> -> vector<64x128xf32>
    %8 = vector.broadcast %2 : vector<1x128xf32> to vector<64x128xf32>
    %9 = arith.addf %7, %8 : vector<64x128xf32>
    %cst_13 = arith.constant 0.000000e+00 : f32
    %10 = vector.broadcast %cst_13 : f32 to vector<8x32xf32>
    %cst_14 = arith.constant 0.000000e+00 : f32
    %11 = vector.broadcast %cst_14 : f32 to vector<8x32xf32>
    %cst_15 = arith.constant 0.000000e+00 : f32
    %12 = vector.broadcast %cst_15 : f32 to vector<8x32xf32>
    %cst_16 = arith.constant 0.000000e+00 : f32
    %13 = vector.broadcast %cst_16 : f32 to vector<8x32xf32>
    %cst_17 = arith.constant dense<0.000000e+00> : vector<8x128xf32>
    %14 = tpu.matmul %10, %1, %cst_17 {dimension_numbers = #tpu.dot_dimension_numbers<[1], [0], [0], [1], [0, 0, 1, 1], [], []>} : vector<8x32xf32>, vector<32x128xf32>, vector<8x128xf32> -> vector<8x128xf32>
    %cst_18 = arith.constant dense<0.000000e+00> : vector<8x128xf32>
    %15 = tpu.matmul %11, %4, %cst_18 {dimension_numbers = #tpu.dot_dimension_numbers<[1], [0], [0], [1], [0, 0, 1, 1], [], []>} : vector<8x32xf32>, vector<32x128xf32>, vector<8x128xf32> -> vector<8x128xf32>
    %16 = vector.extract_strided_slice %9 {offsets = [0, 0], sizes = [8, 128], strides = [1, 1]} : vector<64x128xf32> to vector<8x128xf32>
    %17 = arith.addf %16, %14 : vector<8x128xf32>
    %18 = arith.negf %17 : vector<8x128xf32>
    %19 = math.exp %18 : vector<8x128xf32>
    %cst_19 = arith.constant 1.000000e+00 : f32
    %20 = vector.broadcast %cst_19 : f32 to vector<8x128xf32>
    %21 = arith.addf %20, %19 : vector<8x128xf32>
    %22 = arith.divf %20, %21 : vector<8x128xf32>
    %23 = math.tanh %17 : vector<8x128xf32>
    %24 = vector.extract_strided_slice %22 {offsets = [0, 0], sizes = [8, 32], strides = [1, 1]} : vector<8x128xf32> to vector<8x32xf32>
    %25 = vector.extract_strided_slice %22 {offsets = [0, 32], sizes = [8, 32], strides = [1, 1]} : vector<8x128xf32> to vector<8x32xf32>
    %26 = vector.extract_strided_slice %23 {offsets = [0, 64], sizes = [8, 32], strides = [1, 1]} : vector<8x128xf32> to vector<8x32xf32>
    %27 = vector.extract_strided_slice %22 {offsets = [0, 96], sizes = [8, 32], strides = [1, 1]} : vector<8x128xf32> to vector<8x32xf32>
    %28 = arith.mulf %25, %12 : vector<8x32xf32>
    %29 = arith.mulf %24, %26 : vector<8x32xf32>
    %30 = arith.addf %28, %29 : vector<8x32xf32>
    %31 = math.tanh %30 : vector<8x32xf32>
    %32 = arith.mulf %27, %31 : vector<8x32xf32>
    %cst_20 = arith.constant dense<0.000000e+00> : vector<8x128xf32>
    %33 = tpu.matmul %32, %3, %cst_20 {dimension_numbers = #tpu.dot_dimension_numbers<[1], [0], [0], [1], [0, 0, 1, 1], [], []>} : vector<8x32xf32>, vector<32x128xf32>, vector<8x128xf32> -> vector<8x128xf32>
    %34 = arith.addf %33, %15 : vector<8x128xf32>
    %35 = vector.broadcast %5 : vector<1x128xf32> to vector<8x128xf32>
    %36 = arith.addf %34, %35 : vector<8x128xf32>
    %37 = arith.negf %36 : vector<8x128xf32>
    %38 = math.exp %37 : vector<8x128xf32>
    %cst_21 = arith.constant 1.000000e+00 : f32
    %39 = vector.broadcast %cst_21 : f32 to vector<8x128xf32>
    %40 = arith.addf %39, %38 : vector<8x128xf32>
    %41 = arith.divf %39, %40 : vector<8x128xf32>
    %42 = math.tanh %36 : vector<8x128xf32>
    %43 = vector.extract_strided_slice %41 {offsets = [0, 0], sizes = [8, 32], strides = [1, 1]} : vector<8x128xf32> to vector<8x32xf32>
    %44 = vector.extract_strided_slice %41 {offsets = [0, 32], sizes = [8, 32], strides = [1, 1]} : vector<8x128xf32> to vector<8x32xf32>
    %45 = vector.extract_strided_slice %42 {offsets = [0, 64], sizes = [8, 32], strides = [1, 1]} : vector<8x128xf32> to vector<8x32xf32>
    %46 = vector.extract_strided_slice %41 {offsets = [0, 96], sizes = [8, 32], strides = [1, 1]} : vector<8x128xf32> to vector<8x32xf32>
    %47 = arith.mulf %44, %13 : vector<8x32xf32>
    %48 = arith.mulf %43, %45 : vector<8x32xf32>
    %49 = arith.addf %47, %48 : vector<8x32xf32>
    %50 = math.tanh %49 : vector<8x32xf32>
    %51 = arith.mulf %46, %50 : vector<8x32xf32>
    %cst_22 = arith.constant dense<0.000000e+00> : vector<8x128xf32>
    %52 = tpu.matmul %32, %1, %cst_22 {dimension_numbers = #tpu.dot_dimension_numbers<[1], [0], [0], [1], [0, 0, 1, 1], [], []>} : vector<8x32xf32>, vector<32x128xf32>, vector<8x128xf32> -> vector<8x128xf32>
    %cst_23 = arith.constant dense<0.000000e+00> : vector<8x128xf32>
    %53 = tpu.matmul %51, %4, %cst_23 {dimension_numbers = #tpu.dot_dimension_numbers<[1], [0], [0], [1], [0, 0, 1, 1], [], []>} : vector<8x32xf32>, vector<32x128xf32>, vector<8x128xf32> -> vector<8x128xf32>
    %54 = vector.extract_strided_slice %9 {offsets = [8, 0], sizes = [8, 128], strides = [1, 1]} : vector<64x128xf32> to vector<8x128xf32>
    %55 = arith.addf %54, %52 : vector<8x128xf32>
    %56 = arith.negf %55 : vector<8x128xf32>
    %57 = math.exp %56 : vector<8x128xf32>
    %cst_24 = arith.constant 1.000000e+00 : f32
    %58 = vector.broadcast %cst_24 : f32 to vector<8x128xf32>
    %59 = arith.addf %58, %57 : vector<8x128xf32>
    %60 = arith.divf %58, %59 : vector<8x128xf32>
    %61 = math.tanh %55 : vector<8x128xf32>
    %62 = vector.extract_strided_slice %60 {offsets = [0, 0], sizes = [8, 32], strides = [1, 1]} : vector<8x128xf32> to vector<8x32xf32>
    %63 = vector.extract_strided_slice %60 {offsets = [0, 32], sizes = [8, 32], strides = [1, 1]} : vector<8x128xf32> to vector<8x32xf32>
    %64 = vector.extract_strided_slice %61 {offsets = [0, 64], sizes = [8, 32], strides = [1, 1]} : vector<8x128xf32> to vector<8x32xf32>
    %65 = vector.extract_strided_slice %60 {offsets = [0, 96], sizes = [8, 32], strides = [1, 1]} : vector<8x128xf32> to vector<8x32xf32>
    %66 = arith.mulf %63, %30 : vector<8x32xf32>
    %67 = arith.mulf %62, %64 : vector<8x32xf32>
    %68 = arith.addf %66, %67 : vector<8x32xf32>
    %69 = math.tanh %68 : vector<8x32xf32>
    %70 = arith.mulf %65, %69 : vector<8x32xf32>
    %cst_25 = arith.constant dense<0.000000e+00> : vector<8x128xf32>
    %71 = tpu.matmul %70, %3, %cst_25 {dimension_numbers = #tpu.dot_dimension_numbers<[1], [0], [0], [1], [0, 0, 1, 1], [], []>} : vector<8x32xf32>, vector<32x128xf32>, vector<8x128xf32> -> vector<8x128xf32>
    %72 = arith.addf %71, %53 : vector<8x128xf32>
    %73 = vector.broadcast %5 : vector<1x128xf32> to vector<8x128xf32>
    %74 = arith.addf %72, %73 : vector<8x128xf32>
    %75 = arith.negf %74 : vector<8x128xf32>
    %76 = math.exp %75 : vector<8x128xf32>
    %cst_26 = arith.constant 1.000000e+00 : f32
    %77 = vector.broadcast %cst_26 : f32 to vector<8x128xf32>
    %78 = arith.addf %77, %76 : vector<8x128xf32>
    %79 = arith.divf %77, %78 : vector<8x128xf32>
    %80 = math.tanh %74 : vector<8x128xf32>
    %81 = vector.extract_strided_slice %79 {offsets = [0, 0], sizes = [8, 32], strides = [1, 1]} : vector<8x128xf32> to vector<8x32xf32>
    %82 = vector.extract_strided_slice %79 {offsets = [0, 32], sizes = [8, 32], strides = [1, 1]} : vector<8x128xf32> to vector<8x32xf32>
    %83 = vector.extract_strided_slice %80 {offsets = [0, 64], sizes = [8, 32], strides = [1, 1]} : vector<8x128xf32> to vector<8x32xf32>
    %84 = vector.extract_strided_slice %79 {offsets = [0, 96], sizes = [8, 32], strides = [1, 1]} : vector<8x128xf32> to vector<8x32xf32>
    %85 = arith.mulf %82, %49 : vector<8x32xf32>
    %86 = arith.mulf %81, %83 : vector<8x32xf32>
    %87 = arith.addf %85, %86 : vector<8x32xf32>
    %88 = math.tanh %87 : vector<8x32xf32>
    %89 = arith.mulf %84, %88 : vector<8x32xf32>
    %cst_27 = arith.constant dense<0.000000e+00> : vector<8x128xf32>
    %90 = tpu.matmul %70, %1, %cst_27 {dimension_numbers = #tpu.dot_dimension_numbers<[1], [0], [0], [1], [0, 0, 1, 1], [], []>} : vector<8x32xf32>, vector<32x128xf32>, vector<8x128xf32> -> vector<8x128xf32>
    %cst_28 = arith.constant dense<0.000000e+00> : vector<8x128xf32>
    %91 = tpu.matmul %89, %4, %cst_28 {dimension_numbers = #tpu.dot_dimension_numbers<[1], [0], [0], [1], [0, 0, 1, 1], [], []>} : vector<8x32xf32>, vector<32x128xf32>, vector<8x128xf32> -> vector<8x128xf32>
    %92 = vector.extract_strided_slice %9 {offsets = [16, 0], sizes = [8, 128], strides = [1, 1]} : vector<64x128xf32> to vector<8x128xf32>
    %93 = arith.addf %92, %90 : vector<8x128xf32>
    %94 = arith.negf %93 : vector<8x128xf32>
    %95 = math.exp %94 : vector<8x128xf32>
    %cst_29 = arith.constant 1.000000e+00 : f32
    %96 = vector.broadcast %cst_29 : f32 to vector<8x128xf32>
    %97 = arith.addf %96, %95 : vector<8x128xf32>
    %98 = arith.divf %96, %97 : vector<8x128xf32>
    %99 = math.tanh %93 : vector<8x128xf32>
    %100 = vector.extract_strided_slice %98 {offsets = [0, 0], sizes = [8, 32], strides = [1, 1]} : vector<8x128xf32> to vector<8x32xf32>
    %101 = vector.extract_strided_slice %98 {offsets = [0, 32], sizes = [8, 32], strides = [1, 1]} : vector<8x128xf32> to vector<8x32xf32>
    %102 = vector.extract_strided_slice %99 {offsets = [0, 64], sizes = [8, 32], strides = [1, 1]} : vector<8x128xf32> to vector<8x32xf32>
    %103 = vector.extract_strided_slice %98 {offsets = [0, 96], sizes = [8, 32], strides = [1, 1]} : vector<8x128xf32> to vector<8x32xf32>
    %104 = arith.mulf %101, %68 : vector<8x32xf32>
    %105 = arith.mulf %100, %102 : vector<8x32xf32>
    %106 = arith.addf %104, %105 : vector<8x32xf32>
    %107 = math.tanh %106 : vector<8x32xf32>
    %108 = arith.mulf %103, %107 : vector<8x32xf32>
    %cst_30 = arith.constant dense<0.000000e+00> : vector<8x128xf32>
    %109 = tpu.matmul %108, %3, %cst_30 {dimension_numbers = #tpu.dot_dimension_numbers<[1], [0], [0], [1], [0, 0, 1, 1], [], []>} : vector<8x32xf32>, vector<32x128xf32>, vector<8x128xf32> -> vector<8x128xf32>
    %110 = arith.addf %109, %91 : vector<8x128xf32>
    %111 = vector.broadcast %5 : vector<1x128xf32> to vector<8x128xf32>
    %112 = arith.addf %110, %111 : vector<8x128xf32>
    %113 = arith.negf %112 : vector<8x128xf32>
    %114 = math.exp %113 : vector<8x128xf32>
    %cst_31 = arith.constant 1.000000e+00 : f32
    %115 = vector.broadcast %cst_31 : f32 to vector<8x128xf32>
    %116 = arith.addf %115, %114 : vector<8x128xf32>
    %117 = arith.divf %115, %116 : vector<8x128xf32>
    %118 = math.tanh %112 : vector<8x128xf32>
    %119 = vector.extract_strided_slice %117 {offsets = [0, 0], sizes = [8, 32], strides = [1, 1]} : vector<8x128xf32> to vector<8x32xf32>
    %120 = vector.extract_strided_slice %117 {offsets = [0, 32], sizes = [8, 32], strides = [1, 1]} : vector<8x128xf32> to vector<8x32xf32>
    %121 = vector.extract_strided_slice %118 {offsets = [0, 64], sizes = [8, 32], strides = [1, 1]} : vector<8x128xf32> to vector<8x32xf32>
    %122 = vector.extract_strided_slice %117 {offsets = [0, 96], sizes = [8, 32], strides = [1, 1]} : vector<8x128xf32> to vector<8x32xf32>
    %123 = arith.mulf %120, %87 : vector<8x32xf32>
    %124 = arith.mulf %119, %121 : vector<8x32xf32>
    %125 = arith.addf %123, %124 : vector<8x32xf32>
    %126 = math.tanh %125 : vector<8x32xf32>
    %127 = arith.mulf %122, %126 : vector<8x32xf32>
    %cst_32 = arith.constant dense<0.000000e+00> : vector<8x128xf32>
    %128 = tpu.matmul %108, %1, %cst_32 {dimension_numbers = #tpu.dot_dimension_numbers<[1], [0], [0], [1], [0, 0, 1, 1], [], []>} : vector<8x32xf32>, vector<32x128xf32>, vector<8x128xf32> -> vector<8x128xf32>
    %cst_33 = arith.constant dense<0.000000e+00> : vector<8x128xf32>
    %129 = tpu.matmul %127, %4, %cst_33 {dimension_numbers = #tpu.dot_dimension_numbers<[1], [0], [0], [1], [0, 0, 1, 1], [], []>} : vector<8x32xf32>, vector<32x128xf32>, vector<8x128xf32> -> vector<8x128xf32>
    %130 = vector.extract_strided_slice %9 {offsets = [24, 0], sizes = [8, 128], strides = [1, 1]} : vector<64x128xf32> to vector<8x128xf32>
    %131 = arith.addf %130, %128 : vector<8x128xf32>
    %132 = arith.negf %131 : vector<8x128xf32>
    %133 = math.exp %132 : vector<8x128xf32>
    %cst_34 = arith.constant 1.000000e+00 : f32
    %134 = vector.broadcast %cst_34 : f32 to vector<8x128xf32>
    %135 = arith.addf %134, %133 : vector<8x128xf32>
    %136 = arith.divf %134, %135 : vector<8x128xf32>
    %137 = math.tanh %131 : vector<8x128xf32>
    %138 = vector.extract_strided_slice %136 {offsets = [0, 0], sizes = [8, 32], strides = [1, 1]} : vector<8x128xf32> to vector<8x32xf32>
    %139 = vector.extract_strided_slice %136 {offsets = [0, 32], sizes = [8, 32], strides = [1, 1]} : vector<8x128xf32> to vector<8x32xf32>
    %140 = vector.extract_strided_slice %137 {offsets = [0, 64], sizes = [8, 32], strides = [1, 1]} : vector<8x128xf32> to vector<8x32xf32>
    %141 = vector.extract_strided_slice %136 {offsets = [0, 96], sizes = [8, 32], strides = [1, 1]} : vector<8x128xf32> to vector<8x32xf32>
    %142 = arith.mulf %139, %106 : vector<8x32xf32>
    %143 = arith.mulf %138, %140 : vector<8x32xf32>
    %144 = arith.addf %142, %143 : vector<8x32xf32>
    %145 = math.tanh %144 : vector<8x32xf32>
    %146 = arith.mulf %141, %145 : vector<8x32xf32>
    %cst_35 = arith.constant dense<0.000000e+00> : vector<8x128xf32>
    %147 = tpu.matmul %146, %3, %cst_35 {dimension_numbers = #tpu.dot_dimension_numbers<[1], [0], [0], [1], [0, 0, 1, 1], [], []>} : vector<8x32xf32>, vector<32x128xf32>, vector<8x128xf32> -> vector<8x128xf32>
    %148 = arith.addf %147, %129 : vector<8x128xf32>
    %149 = vector.broadcast %5 : vector<1x128xf32> to vector<8x128xf32>
    %150 = arith.addf %148, %149 : vector<8x128xf32>
    %151 = arith.negf %150 : vector<8x128xf32>
    %152 = math.exp %151 : vector<8x128xf32>
    %cst_36 = arith.constant 1.000000e+00 : f32
    %153 = vector.broadcast %cst_36 : f32 to vector<8x128xf32>
    %154 = arith.addf %153, %152 : vector<8x128xf32>
    %155 = arith.divf %153, %154 : vector<8x128xf32>
    %156 = math.tanh %150 : vector<8x128xf32>
    %157 = vector.extract_strided_slice %155 {offsets = [0, 0], sizes = [8, 32], strides = [1, 1]} : vector<8x128xf32> to vector<8x32xf32>
    %158 = vector.extract_strided_slice %155 {offsets = [0, 32], sizes = [8, 32], strides = [1, 1]} : vector<8x128xf32> to vector<8x32xf32>
    %159 = vector.extract_strided_slice %156 {offsets = [0, 64], sizes = [8, 32], strides = [1, 1]} : vector<8x128xf32> to vector<8x32xf32>
    %160 = vector.extract_strided_slice %155 {offsets = [0, 96], sizes = [8, 32], strides = [1, 1]} : vector<8x128xf32> to vector<8x32xf32>
    %161 = arith.mulf %158, %125 : vector<8x32xf32>
    %162 = arith.mulf %157, %159 : vector<8x32xf32>
    %163 = arith.addf %161, %162 : vector<8x32xf32>
    %164 = math.tanh %163 : vector<8x32xf32>
    %165 = arith.mulf %160, %164 : vector<8x32xf32>
    %cst_37 = arith.constant dense<0.000000e+00> : vector<8x128xf32>
    %166 = tpu.matmul %146, %1, %cst_37 {dimension_numbers = #tpu.dot_dimension_numbers<[1], [0], [0], [1], [0, 0, 1, 1], [], []>} : vector<8x32xf32>, vector<32x128xf32>, vector<8x128xf32> -> vector<8x128xf32>
    %cst_38 = arith.constant dense<0.000000e+00> : vector<8x128xf32>
    %167 = tpu.matmul %165, %4, %cst_38 {dimension_numbers = #tpu.dot_dimension_numbers<[1], [0], [0], [1], [0, 0, 1, 1], [], []>} : vector<8x32xf32>, vector<32x128xf32>, vector<8x128xf32> -> vector<8x128xf32>
    %168 = vector.extract_strided_slice %9 {offsets = [32, 0], sizes = [8, 128], strides = [1, 1]} : vector<64x128xf32> to vector<8x128xf32>
    %169 = arith.addf %168, %166 : vector<8x128xf32>
    %170 = arith.negf %169 : vector<8x128xf32>
    %171 = math.exp %170 : vector<8x128xf32>
    %cst_39 = arith.constant 1.000000e+00 : f32
    %172 = vector.broadcast %cst_39 : f32 to vector<8x128xf32>
    %173 = arith.addf %172, %171 : vector<8x128xf32>
    %174 = arith.divf %172, %173 : vector<8x128xf32>
    %175 = math.tanh %169 : vector<8x128xf32>
    %176 = vector.extract_strided_slice %174 {offsets = [0, 0], sizes = [8, 32], strides = [1, 1]} : vector<8x128xf32> to vector<8x32xf32>
    %177 = vector.extract_strided_slice %174 {offsets = [0, 32], sizes = [8, 32], strides = [1, 1]} : vector<8x128xf32> to vector<8x32xf32>
    %178 = vector.extract_strided_slice %175 {offsets = [0, 64], sizes = [8, 32], strides = [1, 1]} : vector<8x128xf32> to vector<8x32xf32>
    %179 = vector.extract_strided_slice %174 {offsets = [0, 96], sizes = [8, 32], strides = [1, 1]} : vector<8x128xf32> to vector<8x32xf32>
    %180 = arith.mulf %177, %144 : vector<8x32xf32>
    %181 = arith.mulf %176, %178 : vector<8x32xf32>
    %182 = arith.addf %180, %181 : vector<8x32xf32>
    %183 = math.tanh %182 : vector<8x32xf32>
    %184 = arith.mulf %179, %183 : vector<8x32xf32>
    %cst_40 = arith.constant dense<0.000000e+00> : vector<8x128xf32>
    %185 = tpu.matmul %184, %3, %cst_40 {dimension_numbers = #tpu.dot_dimension_numbers<[1], [0], [0], [1], [0, 0, 1, 1], [], []>} : vector<8x32xf32>, vector<32x128xf32>, vector<8x128xf32> -> vector<8x128xf32>
    %186 = arith.addf %185, %167 : vector<8x128xf32>
    %187 = vector.broadcast %5 : vector<1x128xf32> to vector<8x128xf32>
    %188 = arith.addf %186, %187 : vector<8x128xf32>
    %189 = arith.negf %188 : vector<8x128xf32>
    %190 = math.exp %189 : vector<8x128xf32>
    %cst_41 = arith.constant 1.000000e+00 : f32
    %191 = vector.broadcast %cst_41 : f32 to vector<8x128xf32>
    %192 = arith.addf %191, %190 : vector<8x128xf32>
    %193 = arith.divf %191, %192 : vector<8x128xf32>
    %194 = math.tanh %188 : vector<8x128xf32>
    %195 = vector.extract_strided_slice %193 {offsets = [0, 0], sizes = [8, 32], strides = [1, 1]} : vector<8x128xf32> to vector<8x32xf32>
    %196 = vector.extract_strided_slice %193 {offsets = [0, 32], sizes = [8, 32], strides = [1, 1]} : vector<8x128xf32> to vector<8x32xf32>
    %197 = vector.extract_strided_slice %194 {offsets = [0, 64], sizes = [8, 32], strides = [1, 1]} : vector<8x128xf32> to vector<8x32xf32>
    %198 = vector.extract_strided_slice %193 {offsets = [0, 96], sizes = [8, 32], strides = [1, 1]} : vector<8x128xf32> to vector<8x32xf32>
    %199 = arith.mulf %196, %163 : vector<8x32xf32>
    %200 = arith.mulf %195, %197 : vector<8x32xf32>
    %201 = arith.addf %199, %200 : vector<8x32xf32>
    %202 = math.tanh %201 : vector<8x32xf32>
    %203 = arith.mulf %198, %202 : vector<8x32xf32>
    %cst_42 = arith.constant dense<0.000000e+00> : vector<8x128xf32>
    %204 = tpu.matmul %184, %1, %cst_42 {dimension_numbers = #tpu.dot_dimension_numbers<[1], [0], [0], [1], [0, 0, 1, 1], [], []>} : vector<8x32xf32>, vector<32x128xf32>, vector<8x128xf32> -> vector<8x128xf32>
    %cst_43 = arith.constant dense<0.000000e+00> : vector<8x128xf32>
    %205 = tpu.matmul %203, %4, %cst_43 {dimension_numbers = #tpu.dot_dimension_numbers<[1], [0], [0], [1], [0, 0, 1, 1], [], []>} : vector<8x32xf32>, vector<32x128xf32>, vector<8x128xf32> -> vector<8x128xf32>
    %206 = vector.extract_strided_slice %9 {offsets = [40, 0], sizes = [8, 128], strides = [1, 1]} : vector<64x128xf32> to vector<8x128xf32>
    %207 = arith.addf %206, %204 : vector<8x128xf32>
    %208 = arith.negf %207 : vector<8x128xf32>
    %209 = math.exp %208 : vector<8x128xf32>
    %cst_44 = arith.constant 1.000000e+00 : f32
    %210 = vector.broadcast %cst_44 : f32 to vector<8x128xf32>
    %211 = arith.addf %210, %209 : vector<8x128xf32>
    %212 = arith.divf %210, %211 : vector<8x128xf32>
    %213 = math.tanh %207 : vector<8x128xf32>
    %214 = vector.extract_strided_slice %212 {offsets = [0, 0], sizes = [8, 32], strides = [1, 1]} : vector<8x128xf32> to vector<8x32xf32>
    %215 = vector.extract_strided_slice %212 {offsets = [0, 32], sizes = [8, 32], strides = [1, 1]} : vector<8x128xf32> to vector<8x32xf32>
    %216 = vector.extract_strided_slice %213 {offsets = [0, 64], sizes = [8, 32], strides = [1, 1]} : vector<8x128xf32> to vector<8x32xf32>
    %217 = vector.extract_strided_slice %212 {offsets = [0, 96], sizes = [8, 32], strides = [1, 1]} : vector<8x128xf32> to vector<8x32xf32>
    %218 = arith.mulf %215, %182 : vector<8x32xf32>
    %219 = arith.mulf %214, %216 : vector<8x32xf32>
    %220 = arith.addf %218, %219 : vector<8x32xf32>
    %221 = math.tanh %220 : vector<8x32xf32>
    %222 = arith.mulf %217, %221 : vector<8x32xf32>
    %cst_45 = arith.constant dense<0.000000e+00> : vector<8x128xf32>
    %223 = tpu.matmul %222, %3, %cst_45 {dimension_numbers = #tpu.dot_dimension_numbers<[1], [0], [0], [1], [0, 0, 1, 1], [], []>} : vector<8x32xf32>, vector<32x128xf32>, vector<8x128xf32> -> vector<8x128xf32>
    %224 = arith.addf %223, %205 : vector<8x128xf32>
    %225 = vector.broadcast %5 : vector<1x128xf32> to vector<8x128xf32>
    %226 = arith.addf %224, %225 : vector<8x128xf32>
    %227 = arith.negf %226 : vector<8x128xf32>
    %228 = math.exp %227 : vector<8x128xf32>
    %cst_46 = arith.constant 1.000000e+00 : f32
    %229 = vector.broadcast %cst_46 : f32 to vector<8x128xf32>
    %230 = arith.addf %229, %228 : vector<8x128xf32>
    %231 = arith.divf %229, %230 : vector<8x128xf32>
    %232 = math.tanh %226 : vector<8x128xf32>
    %233 = vector.extract_strided_slice %231 {offsets = [0, 0], sizes = [8, 32], strides = [1, 1]} : vector<8x128xf32> to vector<8x32xf32>
    %234 = vector.extract_strided_slice %231 {offsets = [0, 32], sizes = [8, 32], strides = [1, 1]} : vector<8x128xf32> to vector<8x32xf32>
    %235 = vector.extract_strided_slice %232 {offsets = [0, 64], sizes = [8, 32], strides = [1, 1]} : vector<8x128xf32> to vector<8x32xf32>
    %236 = vector.extract_strided_slice %231 {offsets = [0, 96], sizes = [8, 32], strides = [1, 1]} : vector<8x128xf32> to vector<8x32xf32>
    %237 = arith.mulf %234, %201 : vector<8x32xf32>
    %238 = arith.mulf %233, %235 : vector<8x32xf32>
    %239 = arith.addf %237, %238 : vector<8x32xf32>
    %240 = math.tanh %239 : vector<8x32xf32>
    %241 = arith.mulf %236, %240 : vector<8x32xf32>
    %cst_47 = arith.constant dense<0.000000e+00> : vector<8x128xf32>
    %242 = tpu.matmul %222, %1, %cst_47 {dimension_numbers = #tpu.dot_dimension_numbers<[1], [0], [0], [1], [0, 0, 1, 1], [], []>} : vector<8x32xf32>, vector<32x128xf32>, vector<8x128xf32> -> vector<8x128xf32>
    %cst_48 = arith.constant dense<0.000000e+00> : vector<8x128xf32>
    %243 = tpu.matmul %241, %4, %cst_48 {dimension_numbers = #tpu.dot_dimension_numbers<[1], [0], [0], [1], [0, 0, 1, 1], [], []>} : vector<8x32xf32>, vector<32x128xf32>, vector<8x128xf32> -> vector<8x128xf32>
    %244 = vector.extract_strided_slice %9 {offsets = [48, 0], sizes = [8, 128], strides = [1, 1]} : vector<64x128xf32> to vector<8x128xf32>
    %245 = arith.addf %244, %242 : vector<8x128xf32>
    %246 = arith.negf %245 : vector<8x128xf32>
    %247 = math.exp %246 : vector<8x128xf32>
    %cst_49 = arith.constant 1.000000e+00 : f32
    %248 = vector.broadcast %cst_49 : f32 to vector<8x128xf32>
    %249 = arith.addf %248, %247 : vector<8x128xf32>
    %250 = arith.divf %248, %249 : vector<8x128xf32>
    %251 = math.tanh %245 : vector<8x128xf32>
    %252 = vector.extract_strided_slice %250 {offsets = [0, 0], sizes = [8, 32], strides = [1, 1]} : vector<8x128xf32> to vector<8x32xf32>
    %253 = vector.extract_strided_slice %250 {offsets = [0, 32], sizes = [8, 32], strides = [1, 1]} : vector<8x128xf32> to vector<8x32xf32>
    %254 = vector.extract_strided_slice %251 {offsets = [0, 64], sizes = [8, 32], strides = [1, 1]} : vector<8x128xf32> to vector<8x32xf32>
    %255 = vector.extract_strided_slice %250 {offsets = [0, 96], sizes = [8, 32], strides = [1, 1]} : vector<8x128xf32> to vector<8x32xf32>
    %256 = arith.mulf %253, %220 : vector<8x32xf32>
    %257 = arith.mulf %252, %254 : vector<8x32xf32>
    %258 = arith.addf %256, %257 : vector<8x32xf32>
    %259 = math.tanh %258 : vector<8x32xf32>
    %260 = arith.mulf %255, %259 : vector<8x32xf32>
    %cst_50 = arith.constant dense<0.000000e+00> : vector<8x128xf32>
    %261 = tpu.matmul %260, %3, %cst_50 {dimension_numbers = #tpu.dot_dimension_numbers<[1], [0], [0], [1], [0, 0, 1, 1], [], []>} : vector<8x32xf32>, vector<32x128xf32>, vector<8x128xf32> -> vector<8x128xf32>
    %262 = arith.addf %261, %243 : vector<8x128xf32>
    %263 = vector.broadcast %5 : vector<1x128xf32> to vector<8x128xf32>
    %264 = arith.addf %262, %263 : vector<8x128xf32>
    %265 = arith.negf %264 : vector<8x128xf32>
    %266 = math.exp %265 : vector<8x128xf32>
    %cst_51 = arith.constant 1.000000e+00 : f32
    %267 = vector.broadcast %cst_51 : f32 to vector<8x128xf32>
    %268 = arith.addf %267, %266 : vector<8x128xf32>
    %269 = arith.divf %267, %268 : vector<8x128xf32>
    %270 = math.tanh %264 : vector<8x128xf32>
    %271 = vector.extract_strided_slice %269 {offsets = [0, 0], sizes = [8, 32], strides = [1, 1]} : vector<8x128xf32> to vector<8x32xf32>
    %272 = vector.extract_strided_slice %269 {offsets = [0, 32], sizes = [8, 32], strides = [1, 1]} : vector<8x128xf32> to vector<8x32xf32>
    %273 = vector.extract_strided_slice %270 {offsets = [0, 64], sizes = [8, 32], strides = [1, 1]} : vector<8x128xf32> to vector<8x32xf32>
    %274 = vector.extract_strided_slice %269 {offsets = [0, 96], sizes = [8, 32], strides = [1, 1]} : vector<8x128xf32> to vector<8x32xf32>
    %275 = arith.mulf %272, %239 : vector<8x32xf32>
    %276 = arith.mulf %271, %273 : vector<8x32xf32>
    %277 = arith.addf %275, %276 : vector<8x32xf32>
    %278 = math.tanh %277 : vector<8x32xf32>
    %279 = arith.mulf %274, %278 : vector<8x32xf32>
    %cst_52 = arith.constant dense<0.000000e+00> : vector<8x128xf32>
    %280 = tpu.matmul %260, %1, %cst_52 {dimension_numbers = #tpu.dot_dimension_numbers<[1], [0], [0], [1], [0, 0, 1, 1], [], []>} : vector<8x32xf32>, vector<32x128xf32>, vector<8x128xf32> -> vector<8x128xf32>
    %cst_53 = arith.constant dense<0.000000e+00> : vector<8x128xf32>
    %281 = tpu.matmul %279, %4, %cst_53 {dimension_numbers = #tpu.dot_dimension_numbers<[1], [0], [0], [1], [0, 0, 1, 1], [], []>} : vector<8x32xf32>, vector<32x128xf32>, vector<8x128xf32> -> vector<8x128xf32>
    %282 = vector.extract_strided_slice %9 {offsets = [56, 0], sizes = [8, 128], strides = [1, 1]} : vector<64x128xf32> to vector<8x128xf32>
    %283 = arith.addf %282, %280 : vector<8x128xf32>
    %284 = arith.negf %283 : vector<8x128xf32>
    %285 = math.exp %284 : vector<8x128xf32>
    %cst_54 = arith.constant 1.000000e+00 : f32
    %286 = vector.broadcast %cst_54 : f32 to vector<8x128xf32>
    %287 = arith.addf %286, %285 : vector<8x128xf32>
    %288 = arith.divf %286, %287 : vector<8x128xf32>
    %289 = math.tanh %283 : vector<8x128xf32>
    %290 = vector.extract_strided_slice %288 {offsets = [0, 0], sizes = [8, 32], strides = [1, 1]} : vector<8x128xf32> to vector<8x32xf32>
    %291 = vector.extract_strided_slice %288 {offsets = [0, 32], sizes = [8, 32], strides = [1, 1]} : vector<8x128xf32> to vector<8x32xf32>
    %292 = vector.extract_strided_slice %289 {offsets = [0, 64], sizes = [8, 32], strides = [1, 1]} : vector<8x128xf32> to vector<8x32xf32>
    %293 = vector.extract_strided_slice %288 {offsets = [0, 96], sizes = [8, 32], strides = [1, 1]} : vector<8x128xf32> to vector<8x32xf32>
    %294 = arith.mulf %291, %258 : vector<8x32xf32>
    %295 = arith.mulf %290, %292 : vector<8x32xf32>
    %296 = arith.addf %294, %295 : vector<8x32xf32>
    %297 = math.tanh %296 : vector<8x32xf32>
    %298 = arith.mulf %293, %297 : vector<8x32xf32>
    %cst_55 = arith.constant dense<0.000000e+00> : vector<8x128xf32>
    %299 = tpu.matmul %298, %3, %cst_55 {dimension_numbers = #tpu.dot_dimension_numbers<[1], [0], [0], [1], [0, 0, 1, 1], [], []>} : vector<8x32xf32>, vector<32x128xf32>, vector<8x128xf32> -> vector<8x128xf32>
    %300 = arith.addf %299, %281 : vector<8x128xf32>
    %301 = vector.broadcast %5 : vector<1x128xf32> to vector<8x128xf32>
    %302 = arith.addf %300, %301 : vector<8x128xf32>
    %303 = arith.negf %302 : vector<8x128xf32>
    %304 = math.exp %303 : vector<8x128xf32>
    %cst_56 = arith.constant 1.000000e+00 : f32
    %305 = vector.broadcast %cst_56 : f32 to vector<8x128xf32>
    %306 = arith.addf %305, %304 : vector<8x128xf32>
    %307 = arith.divf %305, %306 : vector<8x128xf32>
    %308 = math.tanh %302 : vector<8x128xf32>
    %309 = vector.extract_strided_slice %307 {offsets = [0, 0], sizes = [8, 32], strides = [1, 1]} : vector<8x128xf32> to vector<8x32xf32>
    %310 = vector.extract_strided_slice %307 {offsets = [0, 32], sizes = [8, 32], strides = [1, 1]} : vector<8x128xf32> to vector<8x32xf32>
    %311 = vector.extract_strided_slice %308 {offsets = [0, 64], sizes = [8, 32], strides = [1, 1]} : vector<8x128xf32> to vector<8x32xf32>
    %312 = vector.extract_strided_slice %307 {offsets = [0, 96], sizes = [8, 32], strides = [1, 1]} : vector<8x128xf32> to vector<8x32xf32>
    %313 = arith.mulf %310, %277 : vector<8x32xf32>
    %314 = arith.mulf %309, %311 : vector<8x32xf32>
    %315 = arith.addf %313, %314 : vector<8x32xf32>
    %316 = math.tanh %315 : vector<8x32xf32>
    %317 = arith.mulf %312, %316 : vector<8x32xf32>
    %c0_57 = arith.constant 0 : index
    %c0_58 = arith.constant 0 : index
    %318 = vector.load %arg7[%c0_57, %c0_58] : memref<32x128xf32, #tpu.memory_space<vmem>>, vector<32x128xf32>
    %c0_59 = arith.constant 0 : index
    %c0_60 = arith.constant 0 : index
    %319 = vector.load %arg8[%c0_59, %c0_60] : memref<1x128xf32, #tpu.memory_space<vmem>>, vector<1x128xf32>
    %c0_61 = arith.constant 0 : index
    %c0_62 = arith.constant 0 : index
    %320 = vector.load %arg9[%c0_61, %c0_62] : memref<128x128xf32, #tpu.memory_space<vmem>>, vector<128x128xf32>
    %c0_63 = arith.constant 0 : index
    %c0_64 = arith.constant 0 : index
    %321 = vector.load %arg10[%c0_63, %c0_64] : memref<1x128xf32, #tpu.memory_space<vmem>>, vector<1x128xf32>
    %322 = tpu.concatenate %298, %317 in 0 : vector<8x32xf32>, vector<8x32xf32> -> vector<16x32xf32>
    %cst_65 = arith.constant 0.000000e+00 : f32
    %323 = vector.broadcast %cst_65 : f32 to vector<16x32xf32>
    %324 = arith.maximumf %322, %323 : vector<16x32xf32>
    %cst_66 = arith.constant dense<0.000000e+00> : vector<16x128xf32>
    %325 = tpu.matmul %324, %318, %cst_66 {dimension_numbers = #tpu.dot_dimension_numbers<[1], [0], [0], [1], [0, 0, 1, 1], [], []>} : vector<16x32xf32>, vector<32x128xf32>, vector<16x128xf32> -> vector<16x128xf32>
    %326 = vector.broadcast %319 : vector<1x128xf32> to vector<16x128xf32>
    %327 = arith.addf %325, %326 : vector<16x128xf32>
    %cst_67 = arith.constant 0.000000e+00 : f32
    %328 = vector.broadcast %cst_67 : f32 to vector<16x128xf32>
    %329 = arith.maximumf %327, %328 : vector<16x128xf32>
    %cst_68 = arith.constant dense<0.000000e+00> : vector<16x128xf32>
    %330 = tpu.matmul %329, %320, %cst_68 {dimension_numbers = #tpu.dot_dimension_numbers<[1], [0], [0], [1], [0, 0, 1, 1], [], []>} : vector<16x128xf32>, vector<128x128xf32>, vector<16x128xf32> -> vector<16x128xf32>
    %331 = vector.broadcast %321 : vector<1x128xf32> to vector<16x128xf32>
    %332 = arith.addf %330, %331 : vector<16x128xf32>
    %c0_69 = arith.constant 0 : index
    %c0_70 = arith.constant 0 : index
    %333 = vector.load %arg11[%c0_69, %c0_70] : memref<16x128xf32, #tpu.memory_space<vmem>>, vector<16x128xf32>
    tpu.vector_store %arg11[%c0_69, %c0_70], %332 {strides = array<i32>} : memref<16x128xf32, #tpu.memory_space<vmem>>, vector<16x128xf32>,
    return
  }
}

</mosaic_0001>

<llo_original>
// kernel: tpu_custom_call.1
$region0: #{tpu_custom_call.1}
  #allocation0 [shape = 'u32[]', space=smem, size = 0x4, offset = 0x4, fixed_abs, tag = 'smem constant byte address 0x4 - core index']
  #allocation1 [shape = 'u32[72,128]{1,0:T(1,128)}', space=vmem, size = 0x9000, scoped, tag = 'internal scratch']
  %s0 = inlined_call_operand.vmem [shape: f32[64,16], index: 0, kind: input, shape index: {}]
  %s1 = inlined_call_operand.vmem [shape: f32[16,128], index: 1, kind: input, shape index: {}]
  %s2 = inlined_call_operand.vmem [shape: f32[32,128], index: 2, kind: input, shape index: {}]
  %s3 = inlined_call_operand.vmem [shape: f32[1,128], index: 3, kind: input, shape index: {}]
  %s4 = inlined_call_operand.vmem [shape: f32[32,128], index: 4, kind: input, shape index: {}]
  %s5 = inlined_call_operand.hbm [shape: f32[32,128], index: 5, kind: input, shape index: {}]
  %s6 = inlined_call_operand.vmem [shape: f32[1,128], index: 6, kind: input, shape index: {}]
  %s7 = inlined_call_operand.hbm [shape: f32[32,128], index: 7, kind: input, shape index: {}]
  %s8 = inlined_call_operand.vmem [shape: f32[1,128], index: 8, kind: input, shape index: {}]
  %s9 = inlined_call_operand.hbm [shape: f32[128,128], index: 9, kind: input, shape index: {}]
  %s10 = inlined_call_operand.vmem [shape: f32[1,128], index: 10, kind: input, shape index: {}]
  %s11 = inlined_call_operand.hbm [shape: f32[16,128], index: 11, kind: output, shape index: {}]
  %s12 = sld [smem:[#allocation0]]
  $region66: #{tpu_custom_call.1} parent=0
    _
  %s14 = ssub.s32 1, %s12
  %s15 = scalar_select 0, %s14, %s12
  $region1: #{tpu_custom_call.1} parent=0
    #allocation2 [shape = 'u8[16384]{0}', space=vmem, size = 0x4000, scoped, tag = 'input window, operand 5, single buffered']
    #allocation3 [shape = 's32[1]{0}', space=sflag, size = 0x4, scoped, tag = 'scoped memory for tpu_custom_call.1']
    #allocation4 [shape = 's32[1]{0}', space=sflag, size = 0x4, scoped, tag = 'scoped memory for tpu_custom_call.1']
    #allocation5 [shape = 'u8[16384]{0}', space=vmem, size = 0x4000, scoped, tag = 'input window, operand 7, single buffered']
    #allocation6 [shape = 's32[1]{0}', space=sflag, size = 0x4, scoped, tag = 'scoped memory for tpu_custom_call.1']
    #allocation7 [shape = 'u8[65536]{0}', space=vmem, size = 0x10000, scoped, tag = 'input window, operand 9, single buffered']
    #allocation8 [shape = 'u8[8192]{0}', space=vmem, size = 0x2000, scoped, tag = 'output window, operand 0, single buffered']
    %16 = vsyncpa [#allocation3], 0
    %17 = vsyncpa [#allocation6], 0
    %18 = vsyncpa [#allocation4], 0
    // Predicated region
    $region2: #{tpu_custom_call.1} parent=1 // pred_check
      _
    $region3: #{tpu_custom_call.1} parent=1 // pred_check_branch
      %20 = sbr.rel (0) target = $region5
    $region4: #{tpu_custom_call.1} parent=1 // pred_region
      _
    $region5: #{tpu_custom_call.1} parent=1 // pred_fallthru
      _
    // Predicated region
    $region6: #{tpu_custom_call.1} parent=1 // pred_check
      _
    $region7: #{tpu_custom_call.1} parent=1 // pred_check_branch
      %22 = sbr.rel (0) target = $region9
    $region8: #{tpu_custom_call.1} parent=1 // pred_region
      _
    $region9: #{tpu_custom_call.1} parent=1 // pred_fallthru
      _
    // Predicated region
    $region10: #{tpu_custom_call.1} parent=1 // pred_check
      _
    $region11: #{tpu_custom_call.1} parent=1 // pred_check_branch
      %24 = sbr.rel (0) target = $region13
    $region12: #{tpu_custom_call.1} parent=1 // pred_region
      _
    $region13: #{tpu_custom_call.1} parent=1 // pred_fallthru
      _
    // Predicated region
    $region14: #{tpu_custom_call.1} parent=1 // pred_check
      _
    $region15: #{tpu_custom_call.1} parent=1 // pred_check_branch
      %26 = sbr.rel (0) target = $region17
    $region16: #{tpu_custom_call.1} parent=1 // pred_region
      _
    $region17: #{tpu_custom_call.1} parent=1 // pred_fallthru
      _
    // Predicated region
    $region18: #{tpu_custom_call.1} parent=1 // pred_check
      _
    $region19: #{tpu_custom_call.1} parent=1 // pred_check_branch
      %28 = sbr.rel (0) target = $region21
    $region20: #{tpu_custom_call.1} parent=1 // pred_region
      _
    $region21: #{tpu_custom_call.1} parent=1 // pred_fallthru
      _
    // Predicated region
    $region22: #{tpu_custom_call.1} parent=1 // pred_check
      _
    $region23: #{tpu_custom_call.1} parent=1 // pred_check_branch
      %30 = sbr.rel (0) target = $region25
    $region24: #{tpu_custom_call.1} parent=1 // pred_region
      %32 = vsyncadd [#allocation3], 0
      %s33 = sshll.u32 %s5, 4
      %s34 = int_to_ptr.hbm [resolvable:$true] %s33
      %s35 = sshll.u32 [#allocation2], 4
      %s36 = int_to_ptr.vmem [resolvable:$true] %s35
      %41 = dma.hbm_to_vmem [thread:$0]  %s34, 512, %s36, [#allocation3], 128, 128, 8
    $region25: #{tpu_custom_call.1} parent=1 // pred_fallthru
      _
    // Predicated region
    $region26: #{tpu_custom_call.1} parent=1 // pred_check
      _
    $region27: #{tpu_custom_call.1} parent=1 // pred_check_branch
      %43 = sbr.rel (0) target = $region29
    $region28: #{tpu_custom_call.1} parent=1 // pred_region
      _
    $region29: #{tpu_custom_call.1} parent=1 // pred_fallthru
      _
    // Predicated region
    $region30: #{tpu_custom_call.1} parent=1 // pred_check
      _
    $region31: #{tpu_custom_call.1} parent=1 // pred_check_branch
      %45 = sbr.rel (0) target = $region33
    $region32: #{tpu_custom_call.1} parent=1 // pred_region
      %47 = vsyncadd [#allocation6], 0
      %s48 = sshll.u32 %s7, 4
      %s49 = int_to_ptr.hbm [resolvable:$true] %s48
      %s50 = sshll.u32 [#allocation5], 4
      %s51 = int_to_ptr.vmem [resolvable:$true] %s50
      %56 = dma.hbm_to_vmem [thread:$0]  %s49, 512, %s51, [#allocation6], 128, 128, 8
    $region33: #{tpu_custom_call.1} parent=1 // pred_fallthru
      _
    // Predicated region
    $region34: #{tpu_custom_call.1} parent=1 // pred_check
      _
    $region35: #{tpu_custom_call.1} parent=1 // pred_check_branch
      %58 = sbr.rel (0) target = $region37
    $region36: #{tpu_custom_call.1} parent=1 // pred_region
      _
    $region37: #{tpu_custom_call.1} parent=1 // pred_fallthru
      _
    // Predicated region
    $region38: #{tpu_custom_call.1} parent=1 // pred_check
      _
    $region39: #{tpu_custom_call.1} parent=1 // pred_check_branch
      %60 = sbr.rel (0) target = $region41
    $region40: #{tpu_custom_call.1} parent=1 // pred_region
      %62 = vsyncadd [#allocation6], 0
      %s63 = sshll.u32 %s9, 4
      %s64 = int_to_ptr.hbm [resolvable:$true] %s63
      %s65 = sshll.u32 [#allocation7], 4
      %s66 = int_to_ptr.vmem [resolvable:$true] %s65
      %71 = dma.hbm_to_vmem [thread:$0]  %s64, 2048, %s66, [#allocation6], 128, 128, 8
    $region41: #{tpu_custom_call.1} parent=1 // pred_fallthru
      _
    // Predicated region
    $region42: #{tpu_custom_call.1} parent=1 // pred_check
      _
    $region43: #{tpu_custom_call.1} parent=1 // pred_check_branch
      %73 = sbr.rel (0) target = $region45
    $region44: #{tpu_custom_call.1} parent=1 // pred_region
      _
    $region45: #{tpu_custom_call.1} parent=1 // pred_fallthru
      _
    // Predicated region
    $region46: #{tpu_custom_call.1} parent=1 // pred_check
      _
    $region47: #{tpu_custom_call.1} parent=1 // pred_check_branch
      %75 = sbr.rel (0) target = $region49
    $region48: #{tpu_custom_call.1} parent=1 // pred_region
      %77 = dma.done [#allocation3], 512
    $region49: #{tpu_custom_call.1} parent=1 // pred_fallthru
      _
    // Predicated region
    $region50: #{tpu_custom_call.1} parent=1 // pred_check
      _
    $region51: #{tpu_custom_call.1} parent=1 // pred_check_branch
      %79 = sbr.rel (0) target = $region53
    $region52: #{tpu_custom_call.1} parent=1 // pred_region
      %81 = dma.done [#allocation6], 512
    $region53: #{tpu_custom_call.1} parent=1 // pred_fallthru
      _
    // Predicated region
    $region54: #{tpu_custom_call.1} parent=1 // pred_check
      _
    $region55: #{tpu_custom_call.1} parent=1 // pred_check_branch
      %83 = sbr.rel (0) target = $region57
    $region56: #{tpu_custom_call.1} parent=1 // pred_region
      %85 = dma.done [#allocation6], 2048
    $region57: #{tpu_custom_call.1} parent=1 // pred_fallthru
      _
    %v86 = vld [vmem:[%s1] sm:$0xff]
    %v87 = vld [vmem:[%s1 + $0x8] sm:$0xff]
    %v88 = vld [vmem:[%s2] sm:$0xff]
    %v89 = vld [vmem:[%s2 + $0x8] sm:$0xff]
    %v90 = vld [vmem:[%s2 + $0x10] sm:$0xff]
    %v91 = vld [vmem:[%s2 + $0x18] sm:$0xff]
    %v92 = vld [vmem:[%s3] sm:$0x1]
    %v93 = vld [vmem:[%s4] sm:$0xff]
    %v94 = vld [vmem:[%s4 + $0x8] sm:$0xff]
    %v95 = vld [vmem:[%s4 + $0x10] sm:$0xff]
    %v96 = vld [vmem:[%s4 + $0x18] sm:$0xff]
    %v97 = vld [vmem:[#allocation2] sm:$0xff]
    %v98 = vld [vmem:[#allocation2 + $0x8] sm:$0xff]
    %v99 = vld [vmem:[#allocation2 + $0x10] sm:$0xff]
    %v100 = vld [vmem:[#allocation2 + $0x18] sm:$0xff]
    %v101 = vld [vmem:[%s6] sm:$0x1]
    %v102 = vld [vmem:[%s0] sm:$0xff]
    %v103 = vld [vmem:[%s0 + $0x8] sm:$0xff]
    %v104 = vld [vmem:[%s0 + $0x10] sm:$0xff]
    %v105 = vld [vmem:[%s0 + $0x18] sm:$0xff]
    %v106 = vld [vmem:[%s0 + $0x20] sm:$0xff]
    %v107 = vld [vmem:[%s0 + $0x28] sm:$0xff]
    %v108 = vld [vmem:[%s0 + $0x30] sm:$0xff]
    %v109 = vld [vmem:[%s0 + $0x38] sm:$0xff]
    %v111 = vperm.slane %v92, 0
    %vm113 = vcmask 130048
    %v115 = vsel %vm113, %v102, 0
    %v118 = vsel %vm113, %v103, 0
    %v121 = vsel %vm113, %v104, 0
    %v124 = vsel %vm113, %v105, 0
    %v127 = vsel %vm113, %v106, 0
    %v130 = vsel %vm113, %v107, 0
    %v133 = vsel %vm113, %v108, 0
    %v136 = vsel %vm113, %v109, 0
    %138 = vmatpush.msra.mxu0 0.0
    %139 = vmatpush.msra.mxu0 0.0
    %140 = vmatpush.msra.mxu0 0.0
    %141 = vmatpush.msra.mxu0 0.0
    %142 = vmatpush.msra.mxu0 0.0
    %143 = vmatpush.msra.mxu0 0.0
    %144 = vmatpush.msra.mxu0 0.0
    %145 = vmatpush.msra.mxu0 0.0
    %146 = vmatpush.msra.mxu0 0.0
    %147 = vmatpush.msra.mxu0 0.0
    %148 = vmatpush.msra.mxu0 0.0
    %149 = vmatpush.msra.mxu0 0.0
    %150 = vmatpush.msra.mxu0 0.0
    %151 = vmatpush.msra.mxu0 0.0
    %152 = vmatpush.msra.mxu0 %v87
    %153 = vmatpush.msra.mxu0 %v86
    %154 = vmatmul.f32.gmra.mxu0 %v115
    %v155 = vpop.f32.mrf.mxu0
    %v156 = vadd.f32 %v111, %v155
    %157 = vmatmul.f32.gmra.mxu0 %v118
    %v158 = vpop.f32.mrf.mxu0
    %v159 = vadd.f32 %v111, %v158
    %160 = vmatmul.f32.gmra.mxu0 %v121
    %v161 = vpop.f32.mrf.mxu0
    %v162 = vadd.f32 %v111, %v161
    %163 = vmatmul.f32.gmra.mxu0 %v124
    %v164 = vpop.f32.mrf.mxu0
    %v165 = vadd.f32 %v111, %v164
    %166 = vmatmul.f32.gmra.mxu0 %v127
    %v167 = vpop.f32.mrf.mxu0
    %v168 = vadd.f32 %v111, %v167
    %169 = vmatmul.f32.gmra.mxu0 %v130
    %v170 = vpop.f32.mrf.mxu0
    %v171 = vadd.f32 %v111, %v170
    %172 = vmatmul.f32.gmra.mxu0 %v133
    %v173 = vpop.f32.mrf.mxu0
    %v174 = vadd.f32 %v111, %v173
    %175 = vmatmul.f32.gmra.mxu0 %v136
    %v176 = vpop.f32.mrf.mxu0
    %v177 = vadd.f32 %v111, %v176
    %178 = vdwg.mxu0
    %vm179 = vcmask 261120
    %v181 = vsel %vm179, 0.0, 0
    %183 = vmatpush.msra.mxu0 0.0
    %184 = vmatpush.msra.mxu0 0.0
    %185 = vmatpush.msra.mxu0 0.0
    %186 = vmatpush.msra.mxu0 0.0
    %187 = vmatpush.msra.mxu0 0.0
    %188 = vmatpush.msra.mxu0 0.0
    %189 = vmatpush.msra.mxu0 0.0
    %190 = vmatpush.msra.mxu0 0.0
    %191 = vmatpush.msra.mxu0 0.0
    %192 = vmatpush.msra.mxu0 0.0
    %193 = vmatpush.msra.mxu0 0.0
    %194 = vmatpush.msra.mxu0 0.0
    %195 = vmatpush.msra.mxu0 %v91
    %196 = vmatpush.msra.mxu0 %v90
    %197 = vmatpush.msra.mxu0 %v89
    %198 = vmatpush.msra.mxu0 %v88
    %199 = vmatmul.f32.gmra.mxu0 %v181
    %v200 = vpop.f32.mrf.mxu0
    %v201 = vadd.f32 0.0, %v200
    %202 = vdwg.mxu0
    %203 = vmatpush.msra.mxu0 0.0
    %204 = vmatpush.msra.mxu0 0.0
    %205 = vmatpush.msra.mxu0 0.0
    %206 = vmatpush.msra.mxu0 0.0
    %207 = vmatpush.msra.mxu0 0.0
    %208 = vmatpush.msra.mxu0 0.0
    %209 = vmatpush.msra.mxu0 0.0
    %210 = vmatpush.msra.mxu0 0.0
    %211 = vmatpush.msra.mxu0 0.0
    %212 = vmatpush.msra.mxu0 0.0
    %213 = vmatpush.msra.mxu0 0.0
    %214 = vmatpush.msra.mxu0 0.0
    %215 = vmatpush.msra.mxu0 %v100
    %216 = vmatpush.msra.mxu0 %v99
    %217 = vmatpush.msra.mxu0 %v98
    %218 = vmatpush.msra.mxu0 %v97
    %219 = vmatmul.f32.gmra.mxu0 %v181
    %v220 = vpop.f32.mrf.mxu0
    %v221 = vadd.f32 0.0, %v220
    %222 = vdwg.mxu0
    %v223 = vadd.f32 %v156, %v201
    %v224 = vxor.u32 %v223, 2147483648
    %v225 = vmul.f32 %v224, 1.442695
    %v226 = vpow.pop %v225
    %v227 = vadd.f32 %v226, 1.0
    %v228 = vrcp.pop %v227
    %v229 = vmul.f32 %v227, %v228
    %v230 = vsub.f32 1.0, %v229
    %v231 = vmul.f32 %v228, %v230
    %v232 = vadd.f32 %v228, %v231
    %vm233 = vweird.f32 %v227
    %vm234 = vweird.f32 %v228
    %vm235 = vmor %vm233, %vm234
    %v236 = vsel %vm235, %v228, %v232
    %v237 = vand.u32 2147483647, %v227
    %vm238 = vcmp.eq.f32.partialorder %v237, 8.507059e+37
    %v239 = vand.u32 %v227, 2147483648
    %v240 = vor.u32 1.1754944e-38, %v239
    %v241 = vsel %vm238, %v240, %v236
    %v242 = vmul.f32 1.0, %v241
    %v243 = vtanh.pop %v223
    %v244 = vmul.f32 %v242, 0.0
    %246 = vrot.lane.b32.xlu0 %v243, 64
    %v247 = vpop.permute.xlu0 %246
    %v249 = vmul.f32 %v242, %v247
    %251 = vrot.lane.b32.xlu0 %v249, 32
    %v252 = vpop.permute.xlu0 %251
    %v254 = vadd.f32 %v244, %v252
    %v255 = vtanh.pop %v254
    %257 = vrot.lane.b32.xlu0 %v255, 64
    %v258 = vpop.permute.xlu0 %257
    %v260 = vmul.f32 %v242, %v258
    %262 = vrot.lane.b32.xlu0 %v260, 32
    %v263 = vpop.permute.xlu0 %262
    %v264 = vsel %vm179, %v263, 0
    %266 = vmatpush.msra.mxu0 0.0
    %267 = vmatpush.msra.mxu0 0.0
    %268 = vmatpush.msra.mxu0 0.0
    %269 = vmatpush.msra.mxu0 0.0
    %270 = vmatpush.msra.mxu0 0.0
    %271 = vmatpush.msra.mxu0 0.0
    %272 = vmatpush.msra.mxu0 0.0
    %273 = vmatpush.msra.mxu0 0.0
    %274 = vmatpush.msra.mxu0 0.0
    %275 = vmatpush.msra.mxu0 0.0
    %276 = vmatpush.msra.mxu0 0.0
    %277 = vmatpush.msra.mxu0 0.0
    %278 = vmatpush.msra.mxu0 %v96
    %279 = vmatpush.msra.mxu0 %v95
    %280 = vmatpush.msra.mxu0 %v94
    %281 = vmatpush.msra.mxu0 %v93
    %282 = vmatmul.f32.gmra.mxu0 %v264
    %v283 = vpop.f32.mrf.mxu0
    %v284 = vadd.f32 %v221, %v283
    %285 = vdwg.mxu0
    %v287 = vperm.slane %v101, 0
    %v289 = vadd.f32 %v284, %v287
    %v290 = vxor.u32 %v289, 2147483648
    %v291 = vmul.f32 %v290, 1.442695
    %v292 = vpow.pop %v291
    %v293 = vadd.f32 %v292, 1.0
    %v294 = vrcp.pop %v293
    %v295 = vmul.f32 %v293, %v294
    %v296 = vsub.f32 1.0, %v295
    %v297 = vmul.f32 %v294, %v296
    %v298 = vadd.f32 %v294, %v297
    %vm299 = vweird.f32 %v293
    %vm300 = vweird.f32 %v294
    %vm301 = vmor %vm299, %vm300
    %v302 = vsel %vm301, %v294, %v298
    %v303 = vand.u32 2147483647, %v293
    %vm304 = vcmp.eq.f32.partialorder %v303, 8.507059e+37
    %v305 = vand.u32 %v293, 2147483648
    %v306 = vor.u32 1.1754944e-38, %v305
    %v307 = vsel %vm304, %v306, %v302
    %v308 = vmul.f32 1.0, %v307
    %v309 = vtanh.pop %v289
    %v310 = vmul.f32 %v308, 0.0
    %312 = vrot.lane.b32.xlu0 %v309, 64
    %v313 = vpop.permute.xlu0 %312
    %v315 = vmul.f32 %v308, %v313
    %317 = vrot.lane.b32.xlu0 %v315, 32
    %v318 = vpop.permute.xlu0 %317
    %v320 = vadd.f32 %v310, %v318
    %v321 = vtanh.pop %v320
    %323 = vrot.lane.b32.xlu0 %v321, 64
    %v324 = vpop.permute.xlu0 %323
    %v326 = vmul.f32 %v308, %v324
    %327 = vmatpush.msra.mxu0 0.0
    %328 = vmatpush.msra.mxu0 0.0
    %329 = vmatpush.msra.mxu0 0.0
    %330 = vmatpush.msra.mxu0 0.0
    %331 = vmatpush.msra.mxu0 0.0
    %332 = vmatpush.msra.mxu0 0.0
    %333 = vmatpush.msra.mxu0 0.0
    %334 = vmatpush.msra.mxu0 0.0
    %335 = vmatpush.msra.mxu0 0.0
    %336 = vmatpush.msra.mxu0 0.0
    %337 = vmatpush.msra.mxu0 0.0
    %338 = vmatpush.msra.mxu0 0.0
    %339 = vmatpush.msra.mxu0 %v91
    %340 = vmatpush.msra.mxu0 %v90
    %341 = vmatpush.msra.mxu0 %v89
    %342 = vmatpush.msra.mxu0 %v88
    %343 = vmatmul.f32.gmra.mxu0 %v264
    %v344 = vpop.f32.mrf.mxu0
    %v345 = vadd.f32 0.0, %v344
    %346 = vdwg.mxu0
    %348 = vrot.lane.b32.xlu0 %v326, 32
    %v349 = vpop.permute.xlu0 %348
    %v350 = vsel %vm179, %v349, 0
    %352 = vmatpush.msra.mxu0 0.0
    %353 = vmatpush.msra.mxu0 0.0
    %354 = vmatpush.msra.mxu0 0.0
    %355 = vmatpush.msra.mxu0 0.0
    %356 = vmatpush.msra.mxu0 0.0
    %357 = vmatpush.msra.mxu0 0.0
    %358 = vmatpush.msra.mxu0 0.0
    %359 = vmatpush.msra.mxu0 0.0
    %360 = vmatpush.msra.mxu0 0.0
    %361 = vmatpush.msra.mxu0 0.0
    %362 = vmatpush.msra.mxu0 0.0
    %363 = vmatpush.msra.mxu0 0.0
    %364 = vmatpush.msra.mxu0 %v100
    %365 = vmatpush.msra.mxu0 %v99
    %366 = vmatpush.msra.mxu0 %v98
    %367 = vmatpush.msra.mxu0 %v97
    %368 = vmatmul.f32.gmra.mxu0 %v350
    %v369 = vpop.f32.mrf.mxu0
    %v370 = vadd.f32 0.0, %v369
    %371 = vdwg.mxu0
    %v372 = vadd.f32 %v159, %v345
    %v373 = vxor.u32 %v372, 2147483648
    %v374 = vmul.f32 %v373, 1.442695
    %v375 = vpow.pop %v374
    %v376 = vadd.f32 %v375, 1.0
    %v377 = vrcp.pop %v376
    %v378 = vmul.f32 %v376, %v377
    %v379 = vsub.f32 1.0, %v378
    %v380 = vmul.f32 %v377, %v379
    %v381 = vadd.f32 %v377, %v380
    %vm382 = vweird.f32 %v376
    %vm383 = vweird.f32 %v377
    %vm384 = vmor %vm382, %vm383
    %v385 = vsel %vm384, %v377, %v381
    %v386 = vand.u32 2147483647, %v376
    %vm387 = vcmp.eq.f32.partialorder %v386, 8.507059e+37
    %v388 = vand.u32 %v376, 2147483648
    %v389 = vor.u32 1.1754944e-38, %v388
    %v390 = vsel %vm387, %v389, %v385
    %v391 = vmul.f32 1.0, %v390
    %v392 = vtanh.pop %v372
    %v393 = vmul.f32 %v391, %v254
    %395 = vrot.lane.b32.xlu0 %v392, 64
    %v396 = vpop.permute.xlu0 %395
    %v398 = vmul.f32 %v391, %v396
    %400 = vrot.lane.b32.xlu0 %v398, 32
    %v401 = vpop.permute.xlu0 %400
    %v403 = vadd.f32 %v393, %v401
    %v404 = vtanh.pop %v403
    %406 = vrot.lane.b32.xlu0 %v404, 64
    %v407 = vpop.permute.xlu0 %406
    %v409 = vmul.f32 %v391, %v407
    %411 = vrot.lane.b32.xlu0 %v409, 32
    %v412 = vpop.permute.xlu0 %411
    %v413 = vsel %vm179, %v412, 0
    %415 = vmatpush.msra.mxu0 0.0
    %416 = vmatpush.msra.mxu0 0.0
    %417 = vmatpush.msra.mxu0 0.0
    %418 = vmatpush.msra.mxu0 0.0
    %419 = vmatpush.msra.mxu0 0.0
    %420 = vmatpush.msra.mxu0 0.0
    %421 = vmatpush.msra.mxu0 0.0
    %422 = vmatpush.msra.mxu0 0.0
    %423 = vmatpush.msra.mxu0 0.0
    %424 = vmatpush.msra.mxu0 0.0
    %425 = vmatpush.msra.mxu0 0.0
    %426 = vmatpush.msra.mxu0 0.0
    %427 = vmatpush.msra.mxu0 %v96
    %428 = vmatpush.msra.mxu0 %v95
    %429 = vmatpush.msra.mxu0 %v94
    %430 = vmatpush.msra.mxu0 %v93
    %431 = vmatmul.f32.gmra.mxu0 %v413
    %v432 = vpop.f32.mrf.mxu0
    %v433 = vadd.f32 %v370, %v432
    %434 = vdwg.mxu0
    %v435 = vadd.f32 %v433, %v287
    %v436 = vxor.u32 %v435, 2147483648
    %v437 = vmul.f32 %v436, 1.442695
    %v438 = vpow.pop %v437
    %v439 = vadd.f32 %v438, 1.0
    %v440 = vrcp.pop %v439
    %v441 = vmul.f32 %v439, %v440
    %v442 = vsub.f32 1.0, %v441
    %v443 = vmul.f32 %v440, %v442
    %v444 = vadd.f32 %v440, %v443
    %vm445 = vweird.f32 %v439
    %vm446 = vweird.f32 %v440
    %vm447 = vmor %vm445, %vm446
    %v448 = vsel %vm447, %v440, %v444
    %v449 = vand.u32 2147483647, %v439
    %vm450 = vcmp.eq.f32.partialorder %v449, 8.507059e+37
    %v451 = vand.u32 %v439, 2147483648
    %v452 = vor.u32 1.1754944e-38, %v451
    %v453 = vsel %vm450, %v452, %v448
    %v454 = vmul.f32 1.0, %v453
    %v455 = vtanh.pop %v435
    %v456 = vmul.f32 %v454, %v320
    %458 = vrot.lane.b32.xlu0 %v455, 64
    %v459 = vpop.permute.xlu0 %458
    %v461 = vmul.f32 %v454, %v459
    %463 = vrot.lane.b32.xlu0 %v461, 32
    %v464 = vpop.permute.xlu0 %463
    %v466 = vadd.f32 %v456, %v464
    %v467 = vtanh.pop %v466
    %469 = vrot.lane.b32.xlu0 %v467, 64
    %v470 = vpop.permute.xlu0 %469
    %v472 = vmul.f32 %v454, %v470
    %473 = vmatpush.msra.mxu0 0.0
    %474 = vmatpush.msra.mxu0 0.0
    %475 = vmatpush.msra.mxu0 0.0
    %476 = vmatpush.msra.mxu0 0.0
    %477 = vmatpush.msra.mxu0 0.0
    %478 = vmatpush.msra.mxu0 0.0
    %479 = vmatpush.msra.mxu0 0.0
    %480 = vmatpush.msra.mxu0 0.0
    %481 = vmatpush.msra.mxu0 0.0
    %482 = vmatpush.msra.mxu0 0.0
    %483 = vmatpush.msra.mxu0 0.0
    %484 = vmatpush.msra.mxu0 0.0
    %485 = vmatpush.msra.mxu0 %v91
    %486 = vmatpush.msra.mxu0 %v90
    %487 = vmatpush.msra.mxu0 %v89
    %488 = vmatpush.msra.mxu0 %v88
    %489 = vmatmul.f32.gmra.mxu0 %v413
    %v490 = vpop.f32.mrf.mxu0
    %v491 = vadd.f32 0.0, %v490
    %492 = vdwg.mxu0
    %494 = vrot.lane.b32.xlu0 %v472, 32
    %v495 = vpop.permute.xlu0 %494
    %v496 = vsel %vm179, %v495, 0
    %498 = vmatpush.msra.mxu0 0.0
    %499 = vmatpush.msra.mxu0 0.0
    %500 = vmatpush.msra.mxu0 0.0
    %501 = vmatpush.msra.mxu0 0.0
    %502 = vmatpush.msra.mxu0 0.0
    %503 = vmatpush.msra.mxu0 0.0
    %504 = vmatpush.msra.mxu0 0.0
    %505 = vmatpush.msra.mxu0 0.0
    %506 = vmatpush.msra.mxu0 0.0
    %507 = vmatpush.msra.mxu0 0.0
    %508 = vmatpush.msra.mxu0 0.0
    %509 = vmatpush.msra.mxu0 0.0
    %510 = vmatpush.msra.mxu0 %v100
    %511 = vmatpush.msra.mxu0 %v99
    %512 = vmatpush.msra.mxu0 %v98
    %513 = vmatpush.msra.mxu0 %v97
    %514 = vmatmul.f32.gmra.mxu0 %v496
    %v515 = vpop.f32.mrf.mxu0
    %v516 = vadd.f32 0.0, %v515
    %517 = vdwg.mxu0
    %v518 = vadd.f32 %v162, %v491
    %v519 = vxor.u32 %v518, 2147483648
    %v520 = vmul.f32 %v519, 1.442695
    %v521 = vpow.pop %v520
    %v522 = vadd.f32 %v521, 1.0
    %v523 = vrcp.pop %v522
    %v524 = vmul.f32 %v522, %v523
    %v525 = vsub.f32 1.0, %v524
    %v526 = vmul.f32 %v523, %v525
    %v527 = vadd.f32 %v523, %v526
    %vm528 = vweird.f32 %v522
    %vm529 = vweird.f32 %v523
    %vm530 = vmor %vm528, %vm529
    %v531 = vsel %vm530, %v523, %v527
    %v532 = vand.u32 2147483647, %v522
    %vm533 = vcmp.eq.f32.partialorder %v532, 8.507059e+37
    %v534 = vand.u32 %v522, 2147483648
    %v535 = vor.u32 1.1754944e-38, %v534
    %v536 = vsel %vm533, %v535, %v531
    %v537 = vmul.f32 1.0, %v536
    %v538 = vtanh.pop %v518
    %v539 = vmul.f32 %v537, %v403
    %541 = vrot.lane.b32.xlu0 %v538, 64
    %v542 = vpop.permute.xlu0 %541
    %v544 = vmul.f32 %v537, %v542
    %546 = vrot.lane.b32.xlu0 %v544, 32
    %v547 = vpop.permute.xlu0 %546
    %v549 = vadd.f32 %v539, %v547
    %v550 = vtanh.pop %v549
    %552 = vrot.lane.b32.xlu0 %v550, 64
    %v553 = vpop.permute.xlu0 %552
    %v555 = vmul.f32 %v537, %v553
    %557 = vrot.lane.b32.xlu0 %v555, 32
    %v558 = vpop.permute.xlu0 %557
    %v559 = vsel %vm179, %v558, 0
    %561 = vmatpush.msra.mxu0 0.0
    %562 = vmatpush.msra.mxu0 0.0
    %563 = vmatpush.msra.mxu0 0.0
    %564 = vmatpush.msra.mxu0 0.0
    %565 = vmatpush.msra.mxu0 0.0
    %566 = vmatpush.msra.mxu0 0.0
    %567 = vmatpush.msra.mxu0 0.0
    %568 = vmatpush.msra.mxu0 0.0
    %569 = vmatpush.msra.mxu0 0.0
    %570 = vmatpush.msra.mxu0 0.0
    %571 = vmatpush.msra.mxu0 0.0
    %572 = vmatpush.msra.mxu0 0.0
    %573 = vmatpush.msra.mxu0 %v96
    %574 = vmatpush.msra.mxu0 %v95
    %575 = vmatpush.msra.mxu0 %v94
    %576 = vmatpush.msra.mxu0 %v93
    %577 = vmatmul.f32.gmra.mxu0 %v559
    %v578 = vpop.f32.mrf.mxu0
    %v579 = vadd.f32 %v516, %v578
    %580 = vdwg.mxu0
    %v581 = vadd.f32 %v579, %v287
    %v582 = vxor.u32 %v581, 2147483648
    %v583 = vmul.f32 %v582, 1.442695
    %v584 = vpow.pop %v583
    %v585 = vadd.f32 %v584, 1.0
    %v586 = vrcp.pop %v585
    %v587 = vmul.f32 %v585, %v586
    %v588 = vsub.f32 1.0, %v587
    %v589 = vmul.f32 %v586, %v588
    %v590 = vadd.f32 %v586, %v589
    %vm591 = vweird.f32 %v585
    %vm592 = vweird.f32 %v586
    %vm593 = vmor %vm591, %vm592
    %v594 = vsel %vm593, %v586, %v590
    %v595 = vand.u32 2147483647, %v585
    %vm596 = vcmp.eq.f32.partialorder %v595, 8.507059e+37
    %v597 = vand.u32 %v585, 2147483648
    %v598 = vor.u32 1.1754944e-38, %v597
    %v599 = vsel %vm596, %v598, %v594
    %v600 = vmul.f32 1.0, %v599
    %v601 = vtanh.pop %v581
    %v602 = vmul.f32 %v600, %v466
    %604 = vrot.lane.b32.xlu0 %v601, 64
    %v605 = vpop.permute.xlu0 %604
    %v607 = vmul.f32 %v600, %v605
    %609 = vrot.lane.b32.xlu0 %v607, 32
    %v610 = vpop.permute.xlu0 %609
    %v612 = vadd.f32 %v602, %v610
    %v613 = vtanh.pop %v612
    %615 = vrot.lane.b32.xlu0 %v613, 64
    %v616 = vpop.permute.xlu0 %615
    %v618 = vmul.f32 %v600, %v616
    %619 = vmatpush.msra.mxu0 0.0
    %620 = vmatpush.msra.mxu0 0.0
    %621 = vmatpush.msra.mxu0 0.0
    %622 = vmatpush.msra.mxu0 0.0
    %623 = vmatpush.msra.mxu0 0.0
    %624 = vmatpush.msra.mxu0 0.0
    %625 = vmatpush.msra.mxu0 0.0
    %626 = vmatpush.msra.mxu0 0.0
    %627 = vmatpush.msra.mxu0 0.0
    %628 = vmatpush.msra.mxu0 0.0
    %629 = vmatpush.msra.mxu0 0.0
    %630 = vmatpush.msra.mxu0 0.0
    %631 = vmatpush.msra.mxu0 %v91
    %632 = vmatpush.msra.mxu0 %v90
    %633 = vmatpush.msra.mxu0 %v89
    %634 = vmatpush.msra.mxu0 %v88
    %635 = vmatmul.f32.gmra.mxu0 %v559
    %v636 = vpop.f32.mrf.mxu0
    %v637 = vadd.f32 0.0, %v636
    %638 = vdwg.mxu0
    %640 = vrot.lane.b32.xlu0 %v618, 32
    %v641 = vpop.permute.xlu0 %640
    %v642 = vsel %vm179, %v641, 0
    %644 = vmatpush.msra.mxu0 0.0
    %645 = vmatpush.msra.mxu0 0.0
    %646 = vmatpush.msra.mxu0 0.0
    %647 = vmatpush.msra.mxu0 0.0
    %648 = vmatpush.msra.mxu0 0.0
    %649 = vmatpush.msra.mxu0 0.0
    %650 = vmatpush.msra.mxu0 0.0
    %651 = vmatpush.msra.mxu0 0.0
    %652 = vmatpush.msra.mxu0 0.0
    %653 = vmatpush.msra.mxu0 0.0
    %654 = vmatpush.msra.mxu0 0.0
    %655 = vmatpush.msra.mxu0 0.0
    %656 = vmatpush.msra.mxu0 %v100
    %657 = vmatpush.msra.mxu0 %v99
    %658 = vmatpush.msra.mxu0 %v98
    %659 = vmatpush.msra.mxu0 %v97
    %660 = vmatmul.f32.gmra.mxu0 %v642
    %v661 = vpop.f32.mrf.mxu0
    %v662 = vadd.f32 0.0, %v661
    %663 = vdwg.mxu0
    %v664 = vadd.f32 %v165, %v637
    %v665 = vxor.u32 %v664, 2147483648
    %v666 = vmul.f32 %v665, 1.442695
    %v667 = vpow.pop %v666
    %v668 = vadd.f32 %v667, 1.0
    %v669 = vrcp.pop %v668
    %v670 = vmul.f32 %v668, %v669
    %v671 = vsub.f32 1.0, %v670
    %v672 = vmul.f32 %v669, %v671
    %v673 = vadd.f32 %v669, %v672
    %vm674 = vweird.f32 %v668
    %vm675 = vweird.f32 %v669
    %vm676 = vmor %vm674, %vm675
    %v677 = vsel %vm676, %v669, %v673
    %v678 = vand.u32 2147483647, %v668
    %vm679 = vcmp.eq.f32.partialorder %v678, 8.507059e+37
    %v680 = vand.u32 %v668, 2147483648
    %v681 = vor.u32 1.1754944e-38, %v680
    %v682 = vsel %vm679, %v681, %v677
    %v683 = vmul.f32 1.0, %v682
    %v684 = vtanh.pop %v664
    %v685 = vmul.f32 %v683, %v549
    %687 = vrot.lane.b32.xlu0 %v684, 64
    %v688 = vpop.permute.xlu0 %687
    %v690 = vmul.f32 %v683, %v688
    %692 = vrot.lane.b32.xlu0 %v690, 32
    %v693 = vpop.permute.xlu0 %692
    %v695 = vadd.f32 %v685, %v693
    %v696 = vtanh.pop %v695
    %698 = vrot.lane.b32.xlu0 %v696, 64
    %v699 = vpop.permute.xlu0 %698
    %v701 = vmul.f32 %v683, %v699
    %703 = vrot.lane.b32.xlu0 %v701, 32
    %v704 = vpop.permute.xlu0 %703
    %v705 = vsel %vm179, %v704, 0
    %707 = vmatpush.msra.mxu0 0.0
    %708 = vmatpush.msra.mxu0 0.0
    %709 = vmatpush.msra.mxu0 0.0
    %710 = vmatpush.msra.mxu0 0.0
    %711 = vmatpush.msra.mxu0 0.0
    %712 = vmatpush.msra.mxu0 0.0
    %713 = vmatpush.msra.mxu0 0.0
    %714 = vmatpush.msra.mxu0 0.0
    %715 = vmatpush.msra.mxu0 0.0
    %716 = vmatpush.msra.mxu0 0.0
    %717 = vmatpush.msra.mxu0 0.0
    %718 = vmatpush.msra.mxu0 0.0
    %719 = vmatpush.msra.mxu0 %v96
    %720 = vmatpush.msra.mxu0 %v95
    %721 = vmatpush.msra.mxu0 %v94
    %722 = vmatpush.msra.mxu0 %v93
    %723 = vmatmul.f32.gmra.mxu0 %v705
    %v724 = vpop.f32.mrf.mxu0
    %v725 = vadd.f32 %v662, %v724
    %726 = vdwg.mxu0
    %v727 = vadd.f32 %v725, %v287
    %v728 = vxor.u32 %v727, 2147483648
    %v729 = vmul.f32 %v728, 1.442695
    %v730 = vpow.pop %v729
    %v731 = vadd.f32 %v730, 1.0
    %v732 = vrcp.pop %v731
    %v733 = vmul.f32 %v731, %v732
    %v734 = vsub.f32 1.0, %v733
    %v735 = vmul.f32 %v732, %v734
    %v736 = vadd.f32 %v732, %v735
    %vm737 = vweird.f32 %v731
    %vm738 = vweird.f32 %v732
    %vm739 = vmor %vm737, %vm738
    %v740 = vsel %vm739, %v732, %v736
    %v741 = vand.u32 2147483647, %v731
    %vm742 = vcmp.eq.f32.partialorder %v741, 8.507059e+37
    %v743 = vand.u32 %v731, 2147483648
    %v744 = vor.u32 1.1754944e-38, %v743
    %v745 = vsel %vm742, %v744, %v740
    %v746 = vmul.f32 1.0, %v745
    %v747 = vtanh.pop %v727
    %v748 = vmul.f32 %v746, %v612
    %750 = vrot.lane.b32.xlu0 %v747, 64
    %v751 = vpop.permute.xlu0 %750
    %v753 = vmul.f32 %v746, %v751
    %755 = vrot.lane.b32.xlu0 %v753, 32
    %v756 = vpop.permute.xlu0 %755
    %v758 = vadd.f32 %v748, %v756
    %v759 = vtanh.pop %v758
    %761 = vrot.lane.b32.xlu0 %v759, 64
    %v762 = vpop.permute.xlu0 %761
    %v764 = vmul.f32 %v746, %v762
    %765 = vmatpush.msra.mxu0 0.0
    %766 = vmatpush.msra.mxu0 0.0
    %767 = vmatpush.msra.mxu0 0.0
    %768 = vmatpush.msra.mxu0 0.0
    %769 = vmatpush.msra.mxu0 0.0
    %770 = vmatpush.msra.mxu0 0.0
    %771 = vmatpush.msra.mxu0 0.0
    %772 = vmatpush.msra.mxu0 0.0
    %773 = vmatpush.msra.mxu0 0.0
    %774 = vmatpush.msra.mxu0 0.0
    %775 = vmatpush.msra.mxu0 0.0
    %776 = vmatpush.msra.mxu0 0.0
    %777 = vmatpush.msra.mxu0 %v91
    %778 = vmatpush.msra.mxu0 %v90
    %779 = vmatpush.msra.mxu0 %v89
    %780 = vmatpush.msra.mxu0 %v88
    %781 = vmatmul.f32.gmra.mxu0 %v705
    %v782 = vpop.f32.mrf.mxu0
    %v783 = vadd.f32 0.0, %v782
    %784 = vdwg.mxu0
    %786 = vrot.lane.b32.xlu0 %v764, 32
    %v787 = vpop.permute.xlu0 %786
    %v788 = vsel %vm179, %v787, 0
    %790 = vmatpush.msra.mxu0 0.0
    %791 = vmatpush.msra.mxu0 0.0
    %792 = vmatpush.msra.mxu0 0.0
    %793 = vmatpush.msra.mxu0 0.0
    %794 = vmatpush.msra.mxu0 0.0
    %795 = vmatpush.msra.mxu0 0.0
    %796 = vmatpush.msra.mxu0 0.0
    %797 = vmatpush.msra.mxu0 0.0
    %798 = vmatpush.msra.mxu0 0.0
    %799 = vmatpush.msra.mxu0 0.0
    %800 = vmatpush.msra.mxu0 0.0
    %801 = vmatpush.msra.mxu0 0.0
    %802 = vmatpush.msra.mxu0 %v100
    %803 = vmatpush.msra.mxu0 %v99
    %804 = vmatpush.msra.mxu0 %v98
    %805 = vmatpush.msra.mxu0 %v97
    %806 = vmatmul.f32.gmra.mxu0 %v788
    %v807 = vpop.f32.mrf.mxu0
    %v808 = vadd.f32 0.0, %v807
    %809 = vdwg.mxu0
    %v810 = vadd.f32 %v168, %v783
    %v811 = vxor.u32 %v810, 2147483648
    %v812 = vmul.f32 %v811, 1.442695
    %v813 = vpow.pop %v812
    %v814 = vadd.f32 %v813, 1.0
    %v815 = vrcp.pop %v814
    %v816 = vmul.f32 %v814, %v815
    %v817 = vsub.f32 1.0, %v816
    %v818 = vmul.f32 %v815, %v817
    %v819 = vadd.f32 %v815, %v818
    %vm820 = vweird.f32 %v814
    %vm821 = vweird.f32 %v815
    %vm822 = vmor %vm820, %vm821
    %v823 = vsel %vm822, %v815, %v819
    %v824 = vand.u32 2147483647, %v814
    %vm825 = vcmp.eq.f32.partialorder %v824, 8.507059e+37
    %v826 = vand.u32 %v814, 2147483648
    %v827 = vor.u32 1.1754944e-38, %v826
    %v828 = vsel %vm825, %v827, %v823
    %v829 = vmul.f32 1.0, %v828
    %v830 = vtanh.pop %v810
    %v831 = vmul.f32 %v829, %v695
    %833 = vrot.lane.b32.xlu0 %v830, 64
    %v834 = vpop.permute.xlu0 %833
    %v836 = vmul.f32 %v829, %v834
    %838 = vrot.lane.b32.xlu0 %v836, 32
    %v839 = vpop.permute.xlu0 %838
    %v841 = vadd.f32 %v831, %v839
    %v842 = vtanh.pop %v841
    %844 = vrot.lane.b32.xlu0 %v842, 64
    %v845 = vpop.permute.xlu0 %844
    %v847 = vmul.f32 %v829, %v845
    %849 = vrot.lane.b32.xlu0 %v847, 32
    %v850 = vpop.permute.xlu0 %849
    %v851 = vsel %vm179, %v850, 0
    %853 = vmatpush.msra.mxu0 0.0
    %854 = vmatpush.msra.mxu0 0.0
    %855 = vmatpush.msra.mxu0 0.0
    %856 = vmatpush.msra.mxu0 0.0
    %857 = vmatpush.msra.mxu0 0.0
    %858 = vmatpush.msra.mxu0 0.0
    %859 = vmatpush.msra.mxu0 0.0
    %860 = vmatpush.msra.mxu0 0.0
    %861 = vmatpush.msra.mxu0 0.0
    %862 = vmatpush.msra.mxu0 0.0
    %863 = vmatpush.msra.mxu0 0.0
    %864 = vmatpush.msra.mxu0 0.0
    %865 = vmatpush.msra.mxu0 %v96
    %866 = vmatpush.msra.mxu0 %v95
    %867 = vmatpush.msra.mxu0 %v94
    %868 = vmatpush.msra.mxu0 %v93
    %869 = vmatmul.f32.gmra.mxu0 %v851
    %v870 = vpop.f32.mrf.mxu0
    %v871 = vadd.f32 %v808, %v870
    %872 = vdwg.mxu0
    %v873 = vadd.f32 %v871, %v287
    %v874 = vxor.u32 %v873, 2147483648
    %v875 = vmul.f32 %v874, 1.442695
    %v876 = vpow.pop %v875
    %v877 = vadd.f32 %v876, 1.0
    %v878 = vrcp.pop %v877
    %v879 = vmul.f32 %v877, %v878
    %v880 = vsub.f32 1.0, %v879
    %v881 = vmul.f32 %v878, %v880
    %v882 = vadd.f32 %v878, %v881
    %vm883 = vweird.f32 %v877
    %vm884 = vweird.f32 %v878
    %vm885 = vmor %vm883, %vm884
    %v886 = vsel %vm885, %v878, %v882
    %v887 = vand.u32 2147483647, %v877
    %vm888 = vcmp.eq.f32.partialorder %v887, 8.507059e+37
    %v889 = vand.u32 %v877, 2147483648
    %v890 = vor.u32 1.1754944e-38, %v889
    %v891 = vsel %vm888, %v890, %v886
    %v892 = vmul.f32 1.0, %v891
    %v893 = vtanh.pop %v873
    %v894 = vmul.f32 %v892, %v758
    %896 = vrot.lane.b32.xlu0 %v893, 64
    %v897 = vpop.permute.xlu0 %896
    %v899 = vmul.f32 %v892, %v897
    %901 = vrot.lane.b32.xlu0 %v899, 32
    %v902 = vpop.permute.xlu0 %901
    %v904 = vadd.f32 %v894, %v902
    %v905 = vtanh.pop %v904
    %907 = vrot.lane.b32.xlu0 %v905, 64
    %v908 = vpop.permute.xlu0 %907
    %v910 = vmul.f32 %v892, %v908
    %911 = vmatpush.msra.mxu0 0.0
    %912 = vmatpush.msra.mxu0 0.0
    %913 = vmatpush.msra.mxu0 0.0
    %914 = vmatpush.msra.mxu0 0.0
    %915 = vmatpush.msra.mxu0 0.0
    %916 = vmatpush.msra.mxu0 0.0
    %917 = vmatpush.msra.mxu0 0.0
    %918 = vmatpush.msra.mxu0 0.0
    %919 = vmatpush.msra.mxu0 0.0
    %920 = vmatpush.msra.mxu0 0.0
    %921 = vmatpush.msra.mxu0 0.0
    %922 = vmatpush.msra.mxu0 0.0
    %923 = vmatpush.msra.mxu0 %v91
    %924 = vmatpush.msra.mxu0 %v90
    %925 = vmatpush.msra.mxu0 %v89
    %926 = vmatpush.msra.mxu0 %v88
    %927 = vmatmul.f32.gmra.mxu0 %v851
    %v928 = vpop.f32.mrf.mxu0
    %v929 = vadd.f32 0.0, %v928
    %930 = vdwg.mxu0
    %932 = vrot.lane.b32.xlu0 %v910, 32
    %v933 = vpop.permute.xlu0 %932
    %v934 = vsel %vm179, %v933, 0
    %936 = vmatpush.msra.mxu0 0.0
    %937 = vmatpush.msra.mxu0 0.0
    %938 = vmatpush.msra.mxu0 0.0
    %939 = vmatpush.msra.mxu0 0.0
    %940 = vmatpush.msra.mxu0 0.0
    %941 = vmatpush.msra.mxu0 0.0
    %942 = vmatpush.msra.mxu0 0.0
    %943 = vmatpush.msra.mxu0 0.0
    %944 = vmatpush.msra.mxu0 0.0
    %945 = vmatpush.msra.mxu0 0.0
    %946 = vmatpush.msra.mxu0 0.0
    %947 = vmatpush.msra.mxu0 0.0
    %948 = vmatpush.msra.mxu0 %v100
    %949 = vmatpush.msra.mxu0 %v99
    %950 = vmatpush.msra.mxu0 %v98
    %951 = vmatpush.msra.mxu0 %v97
    %952 = vmatmul.f32.gmra.mxu0 %v934
    %v953 = vpop.f32.mrf.mxu0
    %v954 = vadd.f32 0.0, %v953
    %955 = vdwg.mxu0
    %v956 = vadd.f32 %v171, %v929
    %v957 = vxor.u32 %v956, 2147483648
    %v958 = vmul.f32 %v957, 1.442695
    %v959 = vpow.pop %v958
    %v960 = vadd.f32 %v959, 1.0
    %v961 = vrcp.pop %v960
    %v962 = vmul.f32 %v960, %v961
    %v963 = vsub.f32 1.0, %v962
    %v964 = vmul.f32 %v961, %v963
    %v965 = vadd.f32 %v961, %v964
    %vm966 = vweird.f32 %v960
    %vm967 = vweird.f32 %v961
    %vm968 = vmor %vm966, %vm967
    %v969 = vsel %vm968, %v961, %v965
    %v970 = vand.u32 2147483647, %v960
    %vm971 = vcmp.eq.f32.partialorder %v970, 8.507059e+37
    %v972 = vand.u32 %v960, 2147483648
    %v973 = vor.u32 1.1754944e-38, %v972
    %v974 = vsel %vm971, %v973, %v969
    %v975 = vmul.f32 1.0, %v974
    %v976 = vtanh.pop %v956
    %v977 = vmul.f32 %v975, %v841
    %979 = vrot.lane.b32.xlu0 %v976, 64
    %v980 = vpop.permute.xlu0 %979
    %v982 = vmul.f32 %v975, %v980
    %984 = vrot.lane.b32.xlu0 %v982, 32
    %v985 = vpop.permute.xlu0 %984
    %v987 = vadd.f32 %v977, %v985
    %v988 = vtanh.pop %v987
    %990 = vrot.lane.b32.xlu0 %v988, 64
    %v991 = vpop.permute.xlu0 %990
    %v993 = vmul.f32 %v975, %v991
    %995 = vrot.lane.b32.xlu0 %v993, 32
    %v996 = vpop.permute.xlu0 %995
    %v997 = vsel %vm179, %v996, 0
    %999 = vmatpush.msra.mxu0 0.0
    %1000 = vmatpush.msra.mxu0 0.0
    %1001 = vmatpush.msra.mxu0 0.0
    %1002 = vmatpush.msra.mxu0 0.0
    %1003 = vmatpush.msra.mxu0 0.0
    %1004 = vmatpush.msra.mxu0 0.0
    %1005 = vmatpush.msra.mxu0 0.0
    %1006 = vmatpush.msra.mxu0 0.0
    %1007 = vmatpush.msra.mxu0 0.0
    %1008 = vmatpush.msra.mxu0 0.0
    %1009 = vmatpush.msra.mxu0 0.0
    %1010 = vmatpush.msra.mxu0 0.0
    %1011 = vmatpush.msra.mxu0 %v96
    %1012 = vmatpush.msra.mxu0 %v95
    %1013 = vmatpush.msra.mxu0 %v94
    %1014 = vmatpush.msra.mxu0 %v93
    %1015 = vmatmul.f32.gmra.mxu0 %v997
    %v1016 = vpop.f32.mrf.mxu0
    %v1017 = vadd.f32 %v954, %v1016
    %1018 = vdwg.mxu0
    %v1019 = vadd.f32 %v1017, %v287
    %v1020 = vxor.u32 %v1019, 2147483648
    %v1021 = vmul.f32 %v1020, 1.442695
    %v1022 = vpow.pop %v1021
    %v1023 = vadd.f32 %v1022, 1.0
    %v1024 = vrcp.pop %v1023
    %v1025 = vmul.f32 %v1023, %v1024
    %v1026 = vsub.f32 1.0, %v1025
    %v1027 = vmul.f32 %v1024, %v1026
    %v1028 = vadd.f32 %v1024, %v1027
    %vm1029 = vweird.f32 %v1023
    %vm1030 = vweird.f32 %v1024
    %vm1031 = vmor %vm1029, %vm1030
    %v1032 = vsel %vm1031, %v1024, %v1028
    %v1033 = vand.u32 2147483647, %v1023
    %vm1034 = vcmp.eq.f32.partialorder %v1033, 8.507059e+37
    %v1035 = vand.u32 %v1023, 2147483648
    %v1036 = vor.u32 1.1754944e-38, %v1035
    %v1037 = vsel %vm1034, %v1036, %v1032
    %v1038 = vmul.f32 1.0, %v1037
    %v1039 = vtanh.pop %v1019
    %v1040 = vmul.f32 %v1038, %v904
    %1042 = vrot.lane.b32.xlu0 %v1039, 64
    %v1043 = vpop.permute.xlu0 %1042
    %v1045 = vmul.f32 %v1038, %v1043
    %1047 = vrot.lane.b32.xlu0 %v1045, 32
    %v1048 = vpop.permute.xlu0 %1047
    %v1050 = vadd.f32 %v1040, %v1048
    %v1051 = vtanh.pop %v1050
    %1053 = vrot.lane.b32.xlu0 %v1051, 64
    %v1054 = vpop.permute.xlu0 %1053
    %v1056 = vmul.f32 %v1038, %v1054
    %1057 = vmatpush.msra.mxu0 0.0
    %1058 = vmatpush.msra.mxu0 0.0
    %1059 = vmatpush.msra.mxu0 0.0
    %1060 = vmatpush.msra.mxu0 0.0
    %1061 = vmatpush.msra.mxu0 0.0
    %1062 = vmatpush.msra.mxu0 0.0
    %1063 = vmatpush.msra.mxu0 0.0
    %1064 = vmatpush.msra.mxu0 0.0
    %1065 = vmatpush.msra.mxu0 0.0
    %1066 = vmatpush.msra.mxu0 0.0
    %1067 = vmatpush.msra.mxu0 0.0
    %1068 = vmatpush.msra.mxu0 0.0
    %1069 = vmatpush.msra.mxu0 %v91
    %1070 = vmatpush.msra.mxu0 %v90
    %1071 = vmatpush.msra.mxu0 %v89
    %1072 = vmatpush.msra.mxu0 %v88
    %1073 = vmatmul.f32.gmra.mxu0 %v997
    %v1074 = vpop.f32.mrf.mxu0
    %v1075 = vadd.f32 0.0, %v1074
    %1076 = vdwg.mxu0
    %1078 = vrot.lane.b32.xlu0 %v1056, 32
    %v1079 = vpop.permute.xlu0 %1078
    %v1080 = vsel %vm179, %v1079, 0
    %1082 = vmatpush.msra.mxu0 0.0
    %1083 = vmatpush.msra.mxu0 0.0
    %1084 = vmatpush.msra.mxu0 0.0
    %1085 = vmatpush.msra.mxu0 0.0
    %1086 = vmatpush.msra.mxu0 0.0
    %1087 = vmatpush.msra.mxu0 0.0
    %1088 = vmatpush.msra.mxu0 0.0
    %1089 = vmatpush.msra.mxu0 0.0
    %1090 = vmatpush.msra.mxu0 0.0
    %1091 = vmatpush.msra.mxu0 0.0
    %1092 = vmatpush.msra.mxu0 0.0
    %1093 = vmatpush.msra.mxu0 0.0
    %1094 = vmatpush.msra.mxu0 %v100
    %1095 = vmatpush.msra.mxu0 %v99
    %1096 = vmatpush.msra.mxu0 %v98
    %1097 = vmatpush.msra.mxu0 %v97
    %1098 = vmatmul.f32.gmra.mxu0 %v1080
    %v1099 = vpop.f32.mrf.mxu0
    %v1100 = vadd.f32 0.0, %v1099
    %1101 = vdwg.mxu0
    %v1102 = vadd.f32 %v174, %v1075
    %v1103 = vxor.u32 %v1102, 2147483648
    %v1104 = vmul.f32 %v1103, 1.442695
    %v1105 = vpow.pop %v1104
    %v1106 = vadd.f32 %v1105, 1.0
    %v1107 = vrcp.pop %v1106
    %v1108 = vmul.f32 %v1106, %v1107
    %v1109 = vsub.f32 1.0, %v1108
    %v1110 = vmul.f32 %v1107, %v1109
    %v1111 = vadd.f32 %v1107, %v1110
    %vm1112 = vweird.f32 %v1106
    %vm1113 = vweird.f32 %v1107
    %vm1114 = vmor %vm1112, %vm1113
    %v1115 = vsel %vm1114, %v1107, %v1111
    %v1116 = vand.u32 2147483647, %v1106
    %vm1117 = vcmp.eq.f32.partialorder %v1116, 8.507059e+37
    %v1118 = vand.u32 %v1106, 2147483648
    %v1119 = vor.u32 1.1754944e-38, %v1118
    %v1120 = vsel %vm1117, %v1119, %v1115
    %v1121 = vmul.f32 1.0, %v1120
    %v1122 = vtanh.pop %v1102
    %v1123 = vmul.f32 %v1121, %v987
    %1125 = vrot.lane.b32.xlu0 %v1122, 64
    %v1126 = vpop.permute.xlu0 %1125
    %v1128 = vmul.f32 %v1121, %v1126
    %1130 = vrot.lane.b32.xlu0 %v1128, 32
    %v1131 = vpop.permute.xlu0 %1130
    %v1133 = vadd.f32 %v1123, %v1131
    %v1134 = vtanh.pop %v1133
    %1136 = vrot.lane.b32.xlu0 %v1134, 64
    %v1137 = vpop.permute.xlu0 %1136
    %v1139 = vmul.f32 %v1121, %v1137
    %1141 = vrot.lane.b32.xlu0 %v1139, 32
    %v1142 = vpop.permute.xlu0 %1141
    %v1143 = vsel %vm179, %v1142, 0
    %1145 = vmatpush.msra.mxu0 0.0
    %1146 = vmatpush.msra.mxu0 0.0
    %1147 = vmatpush.msra.mxu0 0.0
    %1148 = vmatpush.msra.mxu0 0.0
    %1149 = vmatpush.msra.mxu0 0.0
    %1150 = vmatpush.msra.mxu0 0.0
    %1151 = vmatpush.msra.mxu0 0.0
    %1152 = vmatpush.msra.mxu0 0.0
    %1153 = vmatpush.msra.mxu0 0.0
    %1154 = vmatpush.msra.mxu0 0.0
    %1155 = vmatpush.msra.mxu0 0.0
    %1156 = vmatpush.msra.mxu0 0.0
    %1157 = vmatpush.msra.mxu0 %v96
    %1158 = vmatpush.msra.mxu0 %v95
    %1159 = vmatpush.msra.mxu0 %v94
    %1160 = vmatpush.msra.mxu0 %v93
    %1161 = vmatmul.f32.gmra.mxu0 %v1143
    %v1162 = vpop.f32.mrf.mxu0
    %v1163 = vadd.f32 %v1100, %v1162
    %1164 = vdwg.mxu0
    %v1165 = vadd.f32 %v1163, %v287
    %v1166 = vxor.u32 %v1165, 2147483648
    %v1167 = vmul.f32 %v1166, 1.442695
    %v1168 = vpow.pop %v1167
    %v1169 = vadd.f32 %v1168, 1.0
    %v1170 = vrcp.pop %v1169
    %v1171 = vmul.f32 %v1169, %v1170
    %v1172 = vsub.f32 1.0, %v1171
    %v1173 = vmul.f32 %v1170, %v1172
    %v1174 = vadd.f32 %v1170, %v1173
    %vm1175 = vweird.f32 %v1169
    %vm1176 = vweird.f32 %v1170
    %vm1177 = vmor %vm1175, %vm1176
    %v1178 = vsel %vm1177, %v1170, %v1174
    %v1179 = vand.u32 2147483647, %v1169
    %vm1180 = vcmp.eq.f32.partialorder %v1179, 8.507059e+37
    %v1181 = vand.u32 %v1169, 2147483648
    %v1182 = vor.u32 1.1754944e-38, %v1181
    %v1183 = vsel %vm1180, %v1182, %v1178
    %v1184 = vmul.f32 1.0, %v1183
    %v1185 = vtanh.pop %v1165
    %v1186 = vmul.f32 %v1184, %v1050
    %1188 = vrot.lane.b32.xlu0 %v1185, 64
    %v1189 = vpop.permute.xlu0 %1188
    %v1191 = vmul.f32 %v1184, %v1189
    %1193 = vrot.lane.b32.xlu0 %v1191, 32
    %v1194 = vpop.permute.xlu0 %1193
    %v1196 = vadd.f32 %v1186, %v1194
    %v1197 = vtanh.pop %v1196
    %1199 = vrot.lane.b32.xlu0 %v1197, 64
    %v1200 = vpop.permute.xlu0 %1199
    %v1202 = vmul.f32 %v1184, %v1200
    %1203 = vmatpush.msra.mxu0 0.0
    %1204 = vmatpush.msra.mxu0 0.0
    %1205 = vmatpush.msra.mxu0 0.0
    %1206 = vmatpush.msra.mxu0 0.0
    %1207 = vmatpush.msra.mxu0 0.0
    %1208 = vmatpush.msra.mxu0 0.0
    %1209 = vmatpush.msra.mxu0 0.0
    %1210 = vmatpush.msra.mxu0 0.0
    %1211 = vmatpush.msra.mxu0 0.0
    %1212 = vmatpush.msra.mxu0 0.0
    %1213 = vmatpush.msra.mxu0 0.0
    %1214 = vmatpush.msra.mxu0 0.0
    %1215 = vmatpush.msra.mxu0 %v91
    %1216 = vmatpush.msra.mxu0 %v90
    %1217 = vmatpush.msra.mxu0 %v89
    %1218 = vmatpush.msra.mxu0 %v88
    %1219 = vmatmul.f32.gmra.mxu0 %v1143
    %v1220 = vpop.f32.mrf.mxu0
    %v1221 = vadd.f32 0.0, %v1220
    %1222 = vdwg.mxu0
    %1224 = vrot.lane.b32.xlu0 %v1202, 32
    %v1225 = vpop.permute.xlu0 %1224
    %v1226 = vsel %vm179, %v1225, 0
    %1228 = vmatpush.msra.mxu0 0.0
    %1229 = vmatpush.msra.mxu0 0.0
    %1230 = vmatpush.msra.mxu0 0.0
    %1231 = vmatpush.msra.mxu0 0.0
    %1232 = vmatpush.msra.mxu0 0.0
    %1233 = vmatpush.msra.mxu0 0.0
    %1234 = vmatpush.msra.mxu0 0.0
    %1235 = vmatpush.msra.mxu0 0.0
    %1236 = vmatpush.msra.mxu0 0.0
    %1237 = vmatpush.msra.mxu0 0.0
    %1238 = vmatpush.msra.mxu0 0.0
    %1239 = vmatpush.msra.mxu0 0.0
    %1240 = vmatpush.msra.mxu0 %v100
    %1241 = vmatpush.msra.mxu0 %v99
    %1242 = vmatpush.msra.mxu0 %v98
    %1243 = vmatpush.msra.mxu0 %v97
    %1244 = vmatmul.f32.gmra.mxu0 %v1226
    %v1245 = vpop.f32.mrf.mxu0
    %v1246 = vadd.f32 0.0, %v1245
    %1247 = vdwg.mxu0
    %v1248 = vadd.f32 %v177, %v1221
    %v1249 = vxor.u32 %v1248, 2147483648
    %v1250 = vmul.f32 %v1249, 1.442695
    %v1251 = vpow.pop %v1250
    %v1252 = vadd.f32 %v1251, 1.0
    %v1253 = vrcp.pop %v1252
    %v1254 = vmul.f32 %v1252, %v1253
    %v1255 = vsub.f32 1.0, %v1254
    %v1256 = vmul.f32 %v1253, %v1255
    %v1257 = vadd.f32 %v1253, %v1256
    %vm1258 = vweird.f32 %v1252
    %vm1259 = vweird.f32 %v1253
    %vm1260 = vmor %vm1258, %vm1259
    %v1261 = vsel %vm1260, %v1253, %v1257
    %v1262 = vand.u32 2147483647, %v1252
    %vm1263 = vcmp.eq.f32.partialorder %v1262, 8.507059e+37
    %v1264 = vand.u32 %v1252, 2147483648
    %v1265 = vor.u32 1.1754944e-38, %v1264
    %v1266 = vsel %vm1263, %v1265, %v1261
    %v1267 = vmul.f32 1.0, %v1266
    %v1268 = vtanh.pop %v1248
    %v1269 = vmul.f32 %v1267, %v1133
    %1271 = vrot.lane.b32.xlu0 %v1268, 64
    %v1272 = vpop.permute.xlu0 %1271
    %v1274 = vmul.f32 %v1267, %v1272
    %1276 = vrot.lane.b32.xlu0 %v1274, 32
    %v1277 = vpop.permute.xlu0 %1276
    %v1279 = vadd.f32 %v1269, %v1277
    %v1280 = vtanh.pop %v1279
    %1282 = vrot.lane.b32.xlu0 %v1280, 64
    %v1283 = vpop.permute.xlu0 %1282
    %v1285 = vmul.f32 %v1267, %v1283
    %1287 = vrot.lane.b32.xlu0 %v1285, 32
    %v1288 = vpop.permute.xlu0 %1287
    %v1289 = vsel %vm179, %v1288, 0
    %1291 = vmatpush.msra.mxu0 0.0
    %1292 = vmatpush.msra.mxu0 0.0
    %1293 = vmatpush.msra.mxu0 0.0
    %1294 = vmatpush.msra.mxu0 0.0
    %1295 = vmatpush.msra.mxu0 0.0
    %1296 = vmatpush.msra.mxu0 0.0
    %1297 = vmatpush.msra.mxu0 0.0
    %1298 = vmatpush.msra.mxu0 0.0
    %1299 = vmatpush.msra.mxu0 0.0
    %1300 = vmatpush.msra.mxu0 0.0
    %1301 = vmatpush.msra.mxu0 0.0
    %1302 = vmatpush.msra.mxu0 0.0
    %1303 = vmatpush.msra.mxu0 %v96
    %1304 = vmatpush.msra.mxu0 %v95
    %1305 = vmatpush.msra.mxu0 %v94
    %1306 = vmatpush.msra.mxu0 %v93
    %1307 = vmatmul.f32.gmra.mxu0 %v1289
    %v1308 = vpop.f32.mrf.mxu0
    %v1309 = vadd.f32 %v1246, %v1308
    %1310 = vdwg.mxu0
    %v1311 = vadd.f32 %v1309, %v287
    %v1312 = vxor.u32 %v1311, 2147483648
    %v1313 = vmul.f32 %v1312, 1.442695
    %v1314 = vpow.pop %v1313
    %v1315 = vadd.f32 %v1314, 1.0
    %v1316 = vrcp.pop %v1315
    %v1317 = vmul.f32 %v1315, %v1316
    %v1318 = vsub.f32 1.0, %v1317
    %v1319 = vmul.f32 %v1316, %v1318
    %v1320 = vadd.f32 %v1316, %v1319
    %vm1321 = vweird.f32 %v1315
    %vm1322 = vweird.f32 %v1316
    %vm1323 = vmor %vm1321, %vm1322
    %v1324 = vsel %vm1323, %v1316, %v1320
    %v1325 = vand.u32 2147483647, %v1315
    %vm1326 = vcmp.eq.f32.partialorder %v1325, 8.507059e+37
    %v1327 = vand.u32 %v1315, 2147483648
    %v1328 = vor.u32 1.1754944e-38, %v1327
    %v1329 = vsel %vm1326, %v1328, %v1324
    %v1330 = vmul.f32 1.0, %v1329
    %v1331 = vtanh.pop %v1311
    %v1332 = vmul.f32 %v1330, %v1196
    %1334 = vrot.lane.b32.xlu0 %v1331, 64
    %v1335 = vpop.permute.xlu0 %1334
    %v1337 = vmul.f32 %v1330, %v1335
    %1339 = vrot.lane.b32.xlu0 %v1337, 32
    %v1340 = vpop.permute.xlu0 %1339
    %v1342 = vadd.f32 %v1332, %v1340
    %v1343 = vtanh.pop %v1342
    %1345 = vrot.lane.b32.xlu0 %v1343, 64
    %v1346 = vpop.permute.xlu0 %1345
    %v1348 = vmul.f32 %v1330, %v1346
    %v1349 = vld [vmem:[#allocation5] sm:$0xff]
    %v1350 = vld [vmem:[#allocation5 + $0x8] sm:$0xff]
    %v1351 = vld [vmem:[#allocation5 + $0x10] sm:$0xff]
    %v1352 = vld [vmem:[#allocation5 + $0x18] sm:$0xff]
    %v1353 = vld [vmem:[%s8] sm:$0x1]
    %v1354 = vld [vmem:[#allocation7] sm:$0xff]
    %v1355 = vld [vmem:[#allocation7 + $0x8] sm:$0xff]
    %v1356 = vld [vmem:[#allocation7 + $0x10] sm:$0xff]
    %v1357 = vld [vmem:[#allocation7 + $0x18] sm:$0xff]
    %v1358 = vld [vmem:[#allocation7 + $0x20] sm:$0xff]
    %v1359 = vld [vmem:[#allocation7 + $0x28] sm:$0xff]
    %v1360 = vld [vmem:[#allocation7 + $0x30] sm:$0xff]
    %v1361 = vld [vmem:[#allocation7 + $0x38] sm:$0xff]
    %v1362 = vld [vmem:[#allocation7 + $0x40] sm:$0xff]
    %v1363 = vld [vmem:[#allocation7 + $0x48] sm:$0xff]
    %v1364 = vld [vmem:[#allocation7 + $0x50] sm:$0xff]
    %v1365 = vld [vmem:[#allocation7 + $0x58] sm:$0xff]
    %v1366 = vld [vmem:[#allocation7 + $0x60] sm:$0xff]
    %v1367 = vld [vmem:[#allocation7 + $0x68] sm:$0xff]
    %v1368 = vld [vmem:[#allocation7 + $0x70] sm:$0xff]
    %v1369 = vld [vmem:[#allocation7 + $0x78] sm:$0xff]
    %v1370 = vld [vmem:[%s10] sm:$0x1]
    %v1371 = vmax.f32 %v1285, 0.0
    %v1372 = vmax.f32 %v1348, 0.0
    %v1374 = vperm.slane %v1353, 0
    %1378 = vrot.lane.b32.xlu0 %v1371, 32
    %v1379 = vpop.permute.xlu0 %1378
    %1380 = vrot.lane.b32.xlu0 %v1372, 32
    %v1381 = vpop.permute.xlu0 %1380
    %v1382 = vsel %vm179, %v1379, 0
    %v1384 = vsel %vm179, %v1381, 0
    %1386 = vmatpush.msra.mxu0 0.0
    %1387 = vmatpush.msra.mxu0 0.0
    %1388 = vmatpush.msra.mxu0 0.0
    %1389 = vmatpush.msra.mxu0 0.0
    %1390 = vmatpush.msra.mxu0 0.0
    %1391 = vmatpush.msra.mxu0 0.0
    %1392 = vmatpush.msra.mxu0 0.0
    %1393 = vmatpush.msra.mxu0 0.0
    %1394 = vmatpush.msra.mxu0 0.0
    %1395 = vmatpush.msra.mxu0 0.0
    %1396 = vmatpush.msra.mxu0 0.0
    %1397 = vmatpush.msra.mxu0 0.0
    %1398 = vmatpush.msra.mxu0 %v1352
    %1399 = vmatpush.msra.mxu0 %v1351
    %1400 = vmatpush.msra.mxu0 %v1350
    %1401 = vmatpush.msra.mxu0 %v1349
    %1402 = vmatmul.f32.gmra.mxu0 %v1382
    %v1403 = vpop.f32.mrf.mxu0
    %v1404 = vadd.f32 %v1374, %v1403
    %1405 = vmatmul.f32.gmra.mxu0 %v1384
    %v1406 = vpop.f32.mrf.mxu0
    %v1407 = vadd.f32 %v1374, %v1406
    %1408 = vdwg.mxu0
    %v1409 = vmax.f32 %v1404, 0.0
    %v1410 = vmax.f32 %v1407, 0.0
    %v1412 = vperm.slane %v1370, 0
    %1414 = vmatpush.msra.mxu0 %v1369
    %1415 = vmatpush.msra.mxu0 %v1368
    %1416 = vmatpush.msra.mxu0 %v1367
    %1417 = vmatpush.msra.mxu0 %v1366
    %1418 = vmatpush.msra.mxu0 %v1365
    %1419 = vmatpush.msra.mxu0 %v1364
    %1420 = vmatpush.msra.mxu0 %v1363
    %1421 = vmatpush.msra.mxu0 %v1362
    %1422 = vmatpush.msra.mxu0 %v1361
    %1423 = vmatpush.msra.mxu0 %v1360
    %1424 = vmatpush.msra.mxu0 %v1359
    %1425 = vmatpush.msra.mxu0 %v1358
    %1426 = vmatpush.msra.mxu0 %v1357
    %1427 = vmatpush.msra.mxu0 %v1356
    %1428 = vmatpush.msra.mxu0 %v1355
    %1429 = vmatpush.msra.mxu0 %v1354
    %1430 = vmatmul.f32.gmra.mxu0 %v1409
    %v1431 = vpop.f32.mrf.mxu0
    %v1432 = vadd.f32 %v1412, %v1431
    %1433 = vmatmul.f32.gmra.mxu0 %v1410
    %v1434 = vpop.f32.mrf.mxu0
    %v1435 = vadd.f32 %v1412, %v1434
    %1436 = vdwg.mxu0
    %1437 = vst [vmem:[#allocation8] sm:$0xff] %v1432
    %1438 = vst [vmem:[#allocation8 + $0x8] sm:$0xff] %v1435
    // Predicated region
    $region58: #{tpu_custom_call.1} parent=1 // pred_check
      _
    $region59: #{tpu_custom_call.1} parent=1 // pred_check_branch
      %1440 = sbr.rel (0) target = $region61
    $region60: #{tpu_custom_call.1} parent=1 // pred_region
      %1442 = vsyncadd [#allocation4], 0
      %s1443 = sshll.u32 [#allocation8], 4
      %s1444 = int_to_ptr.vmem [resolvable:$true] %s1443
      %s1445 = sshll.u32 %s11, 4
      %s1446 = int_to_ptr.hbm [resolvable:$true] %s1445
      %1451 = dma.vmem_to_hbm [thread:$0]  %s1444, 256, %s1446, [#allocation4], 128, 128, 8
    $region61: #{tpu_custom_call.1} parent=1 // pred_fallthru
      _
    // Predicated region
    $region62: #{tpu_custom_call.1} parent=1 // pred_check
      _
    $region63: #{tpu_custom_call.1} parent=1 // pred_check_branch
      %1453 = sbr.rel (0) target = $region65
    $region64: #{tpu_custom_call.1} parent=1 // pred_region
      %1455 = dma.done [#allocation4], 256
    $region65: #{tpu_custom_call.1} parent=1 // pred_fallthru
      _
    %1456 = vsyncpa [#allocation3], 1
    %1457 = vsyncpa [#allocation6], 1
    %1458 = vsyncpa [#allocation4], 1

</llo_original>
